<compile_context>
chip_gen: v5e
topology: v5e:2x2
jax: 0.10.0
libtpu: 0.0.40
codegen_flags: <defaults>
</compile_context>

<pallas_src>
from functools import partial

import jax
import jax.numpy as jnp
from jax.experimental import pallas as pl
from jax.experimental.pallas import tpu as pltpu


def ensemble_kernel(l_ref, r_ref, d_ref, wl_ref, wr_ref, wd_ref, b_ref, s_ref,
                    o_ref, acc_ref):
    """One grid step = (batch tile i, image-feature K tile k).

    l_ref, r_ref : VMEM [Bt, tk]   bf16 left/right image feature K-slices
    d_ref        : VMEM [Bt, D]    bf16 demographics (full K, constant over k)
    wl_ref,wr_ref: VMEM [tk, MOp]  bf16 folded per-member weight K-slabs
    wd_ref       : VMEM [D, MOp]   bf16 folded demo weights (grid-invariant)
    b_ref        : VMEM [1, MOp]   f32 folded per-member biases
    s_ref        : VMEM [MOp, Op]  bf16 selection / ensemble-weight matrix
    o_ref        : VMEM [Bt, Op]   f32 output tile (lane-dense)
    acc_ref      : VMEM [Bt, MOp]  f32 logit accumulator (scratch)
    """
    k = pl.program_id(1)

    @pl.when(k == 0)
    def _init():
        # Initialize the accumulator with the (tiny) demographics contribution;
        # avoids a separate zero pass.
        acc_ref[...] = jnp.dot(d_ref[...], wd_ref[...],
                               preferred_element_type=jnp.float32)

    acc_ref[...] += (
        jnp.dot(l_ref[...], wl_ref[...], preferred_element_type=jnp.float32)
        + jnp.dot(r_ref[...], wr_ref[...], preferred_element_type=jnp.float32))

    @pl.when(k == pl.num_programs(1) - 1)
    def _epilogue():
        # bias + sigmoid + weighted-sum-over-members only after full K reduction.
        probs = jax.nn.sigmoid(acc_ref[...] + b_ref[...])       # torch.sigmoid
        # sum_m w_m * probs[:, m*O:(m+1)*O] as a bf16 lane-dense matmul.
        o_ref[...] = jnp.dot(probs.astype(jnp.bfloat16), s_ref[...],
                             preferred_element_type=jnp.float32)


def prepare_ensemble_params(Ws, bs, ens_w, split_sizes):
    """One-time (model-load time) weight layout: split + fold + pad + cast.

    Ws: [M, F, O], bs: [M, O], ens_w: [M], split_sizes: (F_left, F_right, D).
    Returns (W_left, W_right, W_demo, bias, sel, meta).
    """
    M, F, O = Ws.shape
    F_l, F_r, D = split_sizes
    assert F_l + F_r + D == F
    MOp = pl.cdiv(M * O, 128) * 128
    Op = pl.cdiv(O, 128) * 128

    def fold(W_seg):
        # Fold ensemble axis into the matmul N dim: col m*O + o holds W[m, :, o].
        f = W_seg.shape[1]
        folded = jnp.transpose(W_seg, (1, 0, 2)).reshape(f, M * O)
        out = jnp.zeros((f, MOp), jnp.bfloat16)
        return out.at[:, :M * O].set(folded.astype(jnp.bfloat16))

    W_l = fold(Ws[:, :F_l, :])
    W_r = fold(Ws[:, F_l:F_l + F_r, :])
    W_d = fold(Ws[:, F_l + F_r:, :])
    b_p = jnp.zeros((1, MOp), jnp.float32).at[0, :M * O].set(
        bs.reshape(-1).astype(jnp.float32))

    # Selection matrix: sel[m*O + o, o] = w_m; padded rows stay zero so the
    # sigmoid(0)=0.5 garbage in padded MOp columns contributes nothing.
    rows = jnp.arange(M * O)
    cols = jnp.tile(jnp.arange(O), M)
    vals = jnp.repeat(ens_w.astype(jnp.float32), O)
    sel = (jnp.zeros((MOp, Op), jnp.float32).at[rows, cols].set(vals)
           .astype(jnp.bfloat16))

    meta = (int(F_l), int(F_r), int(D), int(O), int(MOp), int(Op))
    return W_l, W_r, W_d, b_p, sel, meta


def _pick_k_tile(f_img, max_tk=512):
    """Largest multiple-of-128 tile <= max_tk that divides f_img, else f_img."""
    best = 0
    tk = 128
    while tk <= min(f_img, max_tk):
        if f_img % tk == 0:
            best = tk
        tk += 128
    return best if best else f_img


@partial(jax.jit, static_argnames=("meta", "single_buffer_invariants"))
def ensemble_forward(left_img, right_img, demo, W_l, W_r, W_d, b_p, sel,
                     *, meta, single_buffer_invariants=True):
    """left_img/right_img: [B, C, H, W], demo: [B, D] -> [B, O] f32."""
    F_l, F_r, D, O, MOp, Op = meta
    B = left_img.shape[0]

    # Free reshapes + bf16 cast; no feature concatenation / Fp padding copy.
    left = left_img.reshape(B, -1).astype(jnp.bfloat16)
    right = right_img.reshape(B, -1).astype(jnp.bfloat16)
    dem = demo.reshape(B, -1).astype(jnp.bfloat16)
    assert left.shape[1] == F_l and right.shape[1] == F_r and dem.shape[1] == D
    assert F_l == F_r, "left/right image feature counts must match"

    # Batch tile: multiple of 16 (bf16 native sublane tile), 128/256 for big B.
    if B >= 256:
        Bt = 256
    elif B >= 128:
        Bt = 128
    else:
        Bt = max(16, pl.cdiv(B, 16) * 16)
    Bp = pl.cdiv(B, Bt) * Bt
    if Bp != B:
        pad = ((0, Bp - B), (0, 0))
        left = jnp.pad(left, pad)
        right = jnp.pad(right, pad)
        dem = jnp.pad(dem, pad)

    # K tiling over the image-feature segments (bounds VMEM for CNN-scale F).
    tk = _pick_k_tile(F_l)
    n_k = F_l // tk
    grid = (Bp // Bt, n_k)

    def const_spec(shape):
        # Grid-invariant block: single-buffer it (the second buffer is waste).
        if single_buffer_invariants:
            return pl.BlockSpec(shape, lambda i, k: (0, 0),
                                pipeline_mode=pl.Buffered(1))
        return pl.BlockSpec(shape, lambda i, k: (0, 0))

    out = pl.pallas_call(
        ensemble_kernel,
        out_shape=jax.ShapeDtypeStruct((Bp, Op), jnp.float32),
        grid_spec=pltpu.PrefetchScalarGridSpec(
            num_scalar_prefetch=0,
            grid=grid,
            in_specs=[
                pl.BlockSpec((Bt, tk), lambda i, k: (i, k)),    # left K-slice
                pl.BlockSpec((Bt, tk), lambda i, k: (i, k)),    # right K-slice
                pl.BlockSpec((Bt, D), lambda i, k: (i, 0)),     # demo (full K)
                pl.BlockSpec((tk, MOp), lambda i, k: (k, 0)),   # W_left K-slab
                pl.BlockSpec((tk, MOp), lambda i, k: (k, 0)),   # W_right K-slab
                const_spec((D, MOp)),                           # W_demo
                const_spec((1, MOp)),                           # folded biases
                const_spec((MOp, Op)),                          # selection matrix
            ],
            out_specs=pl.BlockSpec((Bt, Op), lambda i, k: (i, 0)),
            scratch_shapes=[pltpu.VMEM((Bt, MOp), jnp.float32)],  # logit acc
        ),
        compiler_params=pltpu.CompilerParams(
            dimension_semantics=("parallel", "arbitrary"),
            vmem_limit_bytes=48 * 1024 * 1024,
        ),
    )(left, right, dem, W_l, W_r, W_d, b_p, sel)

    return out[:B, :O]


if __name__ == "__main__":
    # Small deterministic problem: B=2, C=4, H=W=16, demo=8, M=3 members, O=8.
    B, C, H, W, D = 2, 4, 16, 16, 8
    M, O = 3, 8
    F_img = C * H * W
    F = 2 * F_img + D

    key = jax.random.PRNGKey(0)
    k1, k2, k3, k4, k5 = jax.random.split(key, 5)
    left_img = jax.random.normal(k1, (B, C, H, W), dtype=jnp.float32)
    right_img = jax.random.normal(k2, (B, C, H, W), dtype=jnp.float32)
    demo = jax.random.normal(k3, (B, D), dtype=jnp.float32)

    # Deterministic synthetic per-member parameters (scaled to keep sigmoid
    # away from saturation) and ensemble weights.
    Ws = 0.01 * jax.random.normal(k4, (M, F, O), dtype=jnp.float32)
    bs = 0.1 * jax.random.normal(k5, (M, O), dtype=jnp.float32)
    ens_w = jnp.array([0.5, 0.3, 0.2], dtype=jnp.float32)

    # One-time weight layout (hoisted out of the per-call path).
    W_l, W_r, W_d, b_p, sel, meta = prepare_ensemble_params(
        Ws, bs, ens_w, (F_img, F_img, D))
    W_l, W_r, W_d, b_p, sel = jax.block_until_ready((W_l, W_r, W_d, b_p, sel))

    try:
        out = ensemble_forward(left_img, right_img, demo,
                               W_l, W_r, W_d, b_p, sel,
                               meta=meta, single_buffer_invariants=True)
    except Exception:
        # pl.Buffered(1) pipeline hint unavailable/rejected in this build:
        # fall back to default double buffering (identical results).
        out = ensemble_forward(left_img, right_img, demo,
                               W_l, W_r, W_d, b_p, sel,
                               meta=meta, single_buffer_invariants=False)
    out = jax.block_until_ready(out)

    # Pure-JAX f32 reference of the PyTorch forward.
    x_full = jnp.concatenate(
        [left_img.reshape(B, -1), right_img.reshape(B, -1), demo], axis=1)
    logits = jnp.einsum('bf,mfo->mbo', x_full, Ws) + bs[:, None, :]
    ref = jnp.sum(jax.nn.sigmoid(logits) * ens_w[:, None, None], axis=0)

    assert out.shape == (B, O) and out.dtype == jnp.float32
    # bf16 activation/weight streaming -> loosened tolerance vs f32 reference.
    assert jnp.allclose(out, ref, atol=2e-2, rtol=2e-2), (
        f"max abs err {jnp.max(jnp.abs(out - ref))}")
    print("KERNEL_OK")
</pallas_src>

<mosaic_0001>
module attributes {stable_mosaic.version = 11 : i64} {
  func.func @ensemble_kernel(%arg0: i32, %arg1: i32, %arg2: memref<16x512xbf16, #tpu.memory_space<vmem>>, %arg3: memref<16x512xbf16, #tpu.memory_space<vmem>>, %arg4: memref<16x8xbf16, #tpu.memory_space<vmem>>, %arg5: memref<512x128xbf16, #tpu.memory_space<vmem>>, %arg6: memref<512x128xbf16, #tpu.memory_space<vmem>>, %arg7: memref<8x128xbf16, #tpu.memory_space<vmem>>, %arg8: memref<1x128xf32, #tpu.memory_space<vmem>>, %arg9: memref<128x128xbf16, #tpu.memory_space<vmem>>, %arg10: memref<16x128xf32, #tpu.memory_space<vmem>>, %arg11: memref<16x128xf32, #tpu.memory_space<vmem>>) attributes {dimension_semantics = [#tpu.dimension_semantics<parallel>, #tpu.dimension_semantics<arbitrary>], iteration_bounds = array<i64: 1, 2>, scalar_prefetch = 0 : i64, scratch_operands = 1 : i64, tpu.core_type = #tpu.core_type<tc>, window_params = [{transform_indices = @transform_0, window_bounds = array<i64: 16, 512>}, {transform_indices = @transform_1, window_bounds = array<i64: 16, 512>}, {transform_indices = @transform_2, window_bounds = array<i64: 16, 8>}, {transform_indices = @transform_3, window_bounds = array<i64: 512, 128>}, {transform_indices = @transform_4, window_bounds = array<i64: 512, 128>}, {pipeline_mode = #tpu.pipeline_mode<synchronous>, transform_indices = @transform_5, window_bounds = array<i64: 8, 128>}, {pipeline_mode = #tpu.pipeline_mode<synchronous>, transform_indices = @transform_6, window_bounds = array<i64: 1, 128>}, {pipeline_mode = #tpu.pipeline_mode<synchronous>, transform_indices = @transform_7, window_bounds = array<i64: 128, 128>}, {transform_indices = @transform_8, window_bounds = array<i64: 16, 128>}]} {
    %c0_i32 = arith.constant 0 : i32
    %0 = arith.cmpi eq, %arg1, %c0_i32 : i32
    %1 = arith.extui %0 : i1 to i32
    %c0_i32_0 = arith.constant 0 : i32
    %2 = arith.cmpi ne, %1, %c0_i32_0 : i32
    scf.if %2 {
      %c0_14 = arith.constant 0 : index
      %c0_15 = arith.constant 0 : index
      %16 = vector.load %arg4[%c0_14, %c0_15] : memref<16x8xbf16, #tpu.memory_space<vmem>>, vector<16x8xbf16>
      %c0_16 = arith.constant 0 : index
      %c0_17 = arith.constant 0 : index
      %17 = vector.load %arg7[%c0_16, %c0_17] : memref<8x128xbf16, #tpu.memory_space<vmem>>, vector<8x128xbf16>
      %cst_18 = arith.constant dense<0.000000e+00> : vector<16x128xf32>
      %18 = tpu.matmul %16, %17, %cst_18 {dimension_numbers = #tpu.dot_dimension_numbers<[1], [0], [0], [1], [0, 0, 1, 1], [], []>} : vector<16x8xbf16>, vector<8x128xbf16>, vector<16x128xf32> -> vector<16x128xf32>
      %c0_19 = arith.constant 0 : index
      %c0_20 = arith.constant 0 : index
      %19 = vector.load %arg11[%c0_19, %c0_20] : memref<16x128xf32, #tpu.memory_space<vmem>>, vector<16x128xf32>
      tpu.vector_store %arg11[%c0_19, %c0_20], %18 {strides = array<i32>} : memref<16x128xf32, #tpu.memory_space<vmem>>, vector<16x128xf32>,
    } else {
    }
    %c0 = arith.constant 0 : index
    %c0_1 = arith.constant 0 : index
    %3 = vector.load %arg11[%c0, %c0_1] : memref<16x128xf32, #tpu.memory_space<vmem>>, vector<16x128xf32>
    %c0_2 = arith.constant 0 : index
    %c0_3 = arith.constant 0 : index
    %4 = vector.load %arg2[%c0_2, %c0_3] : memref<16x512xbf16, #tpu.memory_space<vmem>>, vector<16x512xbf16>
    %c0_4 = arith.constant 0 : index
    %c0_5 = arith.constant 0 : index
    %5 = vector.load %arg5[%c0_4, %c0_5] : memref<512x128xbf16, #tpu.memory_space<vmem>>, vector<512x128xbf16>
    %cst = arith.constant dense<0.000000e+00> : vector<16x128xf32>
    %6 = tpu.matmul %4, %5, %cst {dimension_numbers = #tpu.dot_dimension_numbers<[1], [0], [0], [1], [0, 0, 1, 1], [], []>} : vector<16x512xbf16>, vector<512x128xbf16>, vector<16x128xf32> -> vector<16x128xf32>
    %c0_6 = arith.constant 0 : index
    %c0_7 = arith.constant 0 : index
    %7 = vector.load %arg3[%c0_6, %c0_7] : memref<16x512xbf16, #tpu.memory_space<vmem>>, vector<16x512xbf16>
    %c0_8 = arith.constant 0 : index
    %c0_9 = arith.constant 0 : index
    %8 = vector.load %arg6[%c0_8, %c0_9] : memref<512x128xbf16, #tpu.memory_space<vmem>>, vector<512x128xbf16>
    %cst_10 = arith.constant dense<0.000000e+00> : vector<16x128xf32>
    %9 = tpu.matmul %7, %8, %cst_10 {dimension_numbers = #tpu.dot_dimension_numbers<[1], [0], [0], [1], [0, 0, 1, 1], [], []>} : vector<16x512xbf16>, vector<512x128xbf16>, vector<16x128xf32> -> vector<16x128xf32>
    %10 = arith.addf %6, %9 : vector<16x128xf32>
    %11 = arith.addf %3, %10 : vector<16x128xf32>
    %c0_11 = arith.constant 0 : index
    %c0_12 = arith.constant 0 : index
    %12 = vector.load %arg11[%c0_11, %c0_12] : memref<16x128xf32, #tpu.memory_space<vmem>>, vector<16x128xf32>
    tpu.vector_store %arg11[%c0_11, %c0_12], %11 {strides = array<i32>} : memref<16x128xf32, #tpu.memory_space<vmem>>, vector<16x128xf32>,
    %c1_i32 = arith.constant 1 : i32
    %13 = arith.cmpi eq, %arg1, %c1_i32 : i32
    %14 = arith.extui %13 : i1 to i32
    %c0_i32_13 = arith.constant 0 : i32
    %15 = arith.cmpi ne, %14, %c0_i32_13 : i32
    scf.if %15 {
      %c0_14 = arith.constant 0 : index
      %c0_15 = arith.constant 0 : index
      %16 = vector.load %arg11[%c0_14, %c0_15] : memref<16x128xf32, #tpu.memory_space<vmem>>, vector<16x128xf32>
      %c0_16 = arith.constant 0 : index
      %c0_17 = arith.constant 0 : index
      %17 = vector.load %arg8[%c0_16, %c0_17] : memref<1x128xf32, #tpu.memory_space<vmem>>, vector<1x128xf32>
      %18 = vector.broadcast %17 : vector<1x128xf32> to vector<16x128xf32>
      %19 = arith.addf %16, %18 : vector<16x128xf32>
      %20 = arith.negf %19 : vector<16x128xf32>
      %21 = math.exp %20 : vector<16x128xf32>
      %cst_18 = arith.constant 1.000000e+00 : f32
      %22 = vector.broadcast %cst_18 : f32 to vector<16x128xf32>
      %23 = arith.addf %22, %21 : vector<16x128xf32>
      %24 = arith.divf %22, %23 : vector<16x128xf32>
      %25 = arith.truncf %24 : vector<16x128xf32> to vector<16x128xbf16>
      %c0_19 = arith.constant 0 : index
      %c0_20 = arith.constant 0 : index
      %26 = vector.load %arg9[%c0_19, %c0_20] : memref<128x128xbf16, #tpu.memory_space<vmem>>, vector<128x128xbf16>
      %cst_21 = arith.constant dense<0.000000e+00> : vector<16x128xf32>
      %27 = tpu.matmul %25, %26, %cst_21 {dimension_numbers = #tpu.dot_dimension_numbers<[1], [0], [0], [1], [0, 0, 1, 1], [], []>} : vector<16x128xbf16>, vector<128x128xbf16>, vector<16x128xf32> -> vector<16x128xf32>
      %c0_22 = arith.constant 0 : index
      %c0_23 = arith.constant 0 : index
      %28 = vector.load %arg10[%c0_22, %c0_23] : memref<16x128xf32, #tpu.memory_space<vmem>>, vector<16x128xf32>
      tpu.vector_store %arg10[%c0_22, %c0_23], %27 {strides = array<i32>} : memref<16x128xf32, #tpu.memory_space<vmem>>, vector<16x128xf32>,
    } else {
    }
    return
  }
  func.func @transform_0(%arg0: i32, %arg1: i32) -> (i32, i32) {
    %c0_i32 = arith.constant 0 : i32
    return %arg0, %arg1 : i32, i32
  }
  func.func @transform_1(%arg0: i32, %arg1: i32) -> (i32, i32) {
    %c0_i32 = arith.constant 0 : i32
    return %arg0, %arg1 : i32, i32
  }
  func.func @transform_2(%arg0: i32, %arg1: i32) -> (i32, i32) {
    %c0_i32 = arith.constant 0 : i32
    %c0_i32_0 = arith.constant 0 : i32
    return %arg0, %c0_i32 : i32, i32
  }
  func.func @transform_3(%arg0: i32, %arg1: i32) -> (i32, i32) {
    %c0_i32 = arith.constant 0 : i32
    %c0_i32_0 = arith.constant 0 : i32
    return %arg1, %c0_i32 : i32, i32
  }
  func.func @transform_4(%arg0: i32, %arg1: i32) -> (i32, i32) {
    %c0_i32 = arith.constant 0 : i32
    %c0_i32_0 = arith.constant 0 : i32
    return %arg1, %c0_i32 : i32, i32
  }
  func.func @transform_5(%arg0: i32, %arg1: i32) -> (i32, i32) {
    %c0_i32 = arith.constant 0 : i32
    %c0_i32_0 = arith.constant 0 : i32
    %c0_i32_1 = arith.constant 0 : i32
    return %c0_i32, %c0_i32_0 : i32, i32
  }
  func.func @transform_6(%arg0: i32, %arg1: i32) -> (i32, i32) {
    %c0_i32 = arith.constant 0 : i32
    %c0_i32_0 = arith.constant 0 : i32
    %c0_i32_1 = arith.constant 0 : i32
    return %c0_i32, %c0_i32_0 : i32, i32
  }
  func.func @transform_7(%arg0: i32, %arg1: i32) -> (i32, i32) {
    %c0_i32 = arith.constant 0 : i32
    %c0_i32_0 = arith.constant 0 : i32
    %c0_i32_1 = arith.constant 0 : i32
    return %c0_i32, %c0_i32_0 : i32, i32
  }
  func.func @transform_8(%arg0: i32, %arg1: i32) -> (i32, i32) {
    %c0_i32 = arith.constant 0 : i32
    %c0_i32_0 = arith.constant 0 : i32
    return %arg0, %c0_i32 : i32, i32
  }
}

module attributes {stable_mosaic.version = 11 : i64} {
  func.func @ensemble_kernel(%arg0: i32, %arg1: i32, %arg2: memref<16x512xbf16, #tpu.memory_space<vmem>>, %arg3: memref<16x512xbf16, #tpu.memory_space<vmem>>, %arg4: memref<16x8xbf16, #tpu.memory_space<vmem>>, %arg5: memref<512x128xbf16, #tpu.memory_space<vmem>>, %arg6: memref<512x128xbf16, #tpu.memory_space<vmem>>, %arg7: memref<8x128xbf16, #tpu.memory_space<vmem>>, %arg8: memref<1x128xf32, #tpu.memory_space<vmem>>, %arg9: memref<128x128xbf16, #tpu.memory_space<vmem>>, %arg10: memref<16x128xf32, #tpu.memory_space<vmem>>, %arg11: memref<16x128xf32, #tpu.memory_space<vmem>>) attributes {dimension_semantics = [#tpu.dimension_semantics<parallel>, #tpu.dimension_semantics<arbitrary>], iteration_bounds = array<i64: 1, 2>, scalar_prefetch = 0 : i64, scratch_operands = 1 : i64, tpu.core_type = #tpu.core_type<tc>, window_params = [{transform_indices = @transform_0, window_bounds = array<i64: 16, 512>}, {transform_indices = @transform_1, window_bounds = array<i64: 16, 512>}, {transform_indices = @transform_2, window_bounds = array<i64: 16, 8>}, {transform_indices = @transform_3, window_bounds = array<i64: 512, 128>}, {transform_indices = @transform_4, window_bounds = array<i64: 512, 128>}, {pipeline_mode = #tpu.pipeline_mode<synchronous>, transform_indices = @transform_5, window_bounds = array<i64: 8, 128>}, {pipeline_mode = #tpu.pipeline_mode<synchronous>, transform_indices = @transform_6, window_bounds = array<i64: 1, 128>}, {pipeline_mode = #tpu.pipeline_mode<synchronous>, transform_indices = @transform_7, window_bounds = array<i64: 128, 128>}, {transform_indices = @transform_8, window_bounds = array<i64: 16, 128>}]} {
    %c0_i32 = arith.constant 0 : i32
    %0 = arith.cmpi eq, %arg1, %c0_i32 : i32
    %1 = arith.extui %0 : i1 to i32
    %c0_i32_0 = arith.constant 0 : i32
    %2 = arith.cmpi ne, %1, %c0_i32_0 : i32
    scf.if %2 {
      %c0_14 = arith.constant 0 : index
      %c0_15 = arith.constant 0 : index
      %16 = vector.load %arg4[%c0_14, %c0_15] : memref<16x8xbf16, #tpu.memory_space<vmem>>, vector<16x8xbf16>
      %c0_16 = arith.constant 0 : index
      %c0_17 = arith.constant 0 : index
      %17 = vector.load %arg7[%c0_16, %c0_17] : memref<8x128xbf16, #tpu.memory_space<vmem>>, vector<8x128xbf16>
      %cst_18 = arith.constant dense<0.000000e+00> : vector<16x128xf32>
      %18 = tpu.matmul %16, %17, %cst_18 {dimension_numbers = #tpu.dot_dimension_numbers<[1], [0], [0], [1], [0, 0, 1, 1], [], []>} : vector<16x8xbf16>, vector<8x128xbf16>, vector<16x128xf32> -> vector<16x128xf32>
      %c0_19 = arith.constant 0 : index
      %c0_20 = arith.constant 0 : index
      %19 = vector.load %arg11[%c0_19, %c0_20] : memref<16x128xf32, #tpu.memory_space<vmem>>, vector<16x128xf32>
      tpu.vector_store %arg11[%c0_19, %c0_20], %18 {strides = array<i32>} : memref<16x128xf32, #tpu.memory_space<vmem>>, vector<16x128xf32>,
    } else {
    }
    %c0 = arith.constant 0 : index
    %c0_1 = arith.constant 0 : index
    %3 = vector.load %arg11[%c0, %c0_1] : memref<16x128xf32, #tpu.memory_space<vmem>>, vector<16x128xf32>
    %c0_2 = arith.constant 0 : index
    %c0_3 = arith.constant 0 : index
    %4 = vector.load %arg2[%c0_2, %c0_3] : memref<16x512xbf16, #tpu.memory_space<vmem>>, vector<16x512xbf16>
    %c0_4 = arith.constant 0 : index
    %c0_5 = arith.constant 0 : index
    %5 = vector.load %arg5[%c0_4, %c0_5] : memref<512x128xbf16, #tpu.memory_space<vmem>>, vector<512x128xbf16>
    %cst = arith.constant dense<0.000000e+00> : vector<16x128xf32>
    %6 = tpu.matmul %4, %5, %cst {dimension_numbers = #tpu.dot_dimension_numbers<[1], [0], [0], [1], [0, 0, 1, 1], [], []>} : vector<16x512xbf16>, vector<512x128xbf16>, vector<16x128xf32> -> vector<16x128xf32>
    %c0_6 = arith.constant 0 : index
    %c0_7 = arith.constant 0 : index
    %7 = vector.load %arg3[%c0_6, %c0_7] : memref<16x512xbf16, #tpu.memory_space<vmem>>, vector<16x512xbf16>
    %c0_8 = arith.constant 0 : index
    %c0_9 = arith.constant 0 : index
    %8 = vector.load %arg6[%c0_8, %c0_9] : memref<512x128xbf16, #tpu.memory_space<vmem>>, vector<512x128xbf16>
    %cst_10 = arith.constant dense<0.000000e+00> : vector<16x128xf32>
    %9 = tpu.matmul %7, %8, %cst_10 {dimension_numbers = #tpu.dot_dimension_numbers<[1], [0], [0], [1], [0, 0, 1, 1], [], []>} : vector<16x512xbf16>, vector<512x128xbf16>, vector<16x128xf32> -> vector<16x128xf32>
    %10 = arith.addf %6, %9 : vector<16x128xf32>
    %11 = arith.addf %3, %10 : vector<16x128xf32>
    %c0_11 = arith.constant 0 : index
    %c0_12 = arith.constant 0 : index
    %12 = vector.load %arg11[%c0_11, %c0_12] : memref<16x128xf32, #tpu.memory_space<vmem>>, vector<16x128xf32>
    tpu.vector_store %arg11[%c0_11, %c0_12], %11 {strides = array<i32>} : memref<16x128xf32, #tpu.memory_space<vmem>>, vector<16x128xf32>,
    %c1_i32 = arith.constant 1 : i32
    %13 = arith.cmpi eq, %arg1, %c1_i32 : i32
    %14 = arith.extui %13 : i1 to i32
    %c0_i32_13 = arith.constant 0 : i32
    %15 = arith.cmpi ne, %14, %c0_i32_13 : i32
    scf.if %15 {
      %c0_14 = arith.constant 0 : index
      %c0_15 = arith.constant 0 : index
      %16 = vector.load %arg11[%c0_14, %c0_15] : memref<16x128xf32, #tpu.memory_space<vmem>>, vector<16x128xf32>
      %c0_16 = arith.constant 0 : index
      %c0_17 = arith.constant 0 : index
      %17 = vector.load %arg8[%c0_16, %c0_17] : memref<1x128xf32, #tpu.memory_space<vmem>>, vector<1x128xf32>
      %18 = vector.broadcast %17 : vector<1x128xf32> to vector<16x128xf32>
      %19 = arith.addf %16, %18 : vector<16x128xf32>
      %20 = arith.negf %19 : vector<16x128xf32>
      %21 = math.exp %20 : vector<16x128xf32>
      %cst_18 = arith.constant 1.000000e+00 : f32
      %22 = vector.broadcast %cst_18 : f32 to vector<16x128xf32>
      %23 = arith.addf %22, %21 : vector<16x128xf32>
      %24 = arith.divf %22, %23 : vector<16x128xf32>
      %25 = arith.truncf %24 : vector<16x128xf32> to vector<16x128xbf16>
      %c0_19 = arith.constant 0 : index
      %c0_20 = arith.constant 0 : index
      %26 = vector.load %arg9[%c0_19, %c0_20] : memref<128x128xbf16, #tpu.memory_space<vmem>>, vector<128x128xbf16>
      %cst_21 = arith.constant dense<0.000000e+00> : vector<16x128xf32>
      %27 = tpu.matmul %25, %26, %cst_21 {dimension_numbers = #tpu.dot_dimension_numbers<[1], [0], [0], [1], [0, 0, 1, 1], [], []>} : vector<16x128xbf16>, vector<128x128xbf16>, vector<16x128xf32> -> vector<16x128xf32>
      %c0_22 = arith.constant 0 : index
      %c0_23 = arith.constant 0 : index
      %28 = vector.load %arg10[%c0_22, %c0_23] : memref<16x128xf32, #tpu.memory_space<vmem>>, vector<16x128xf32>
      tpu.vector_store %arg10[%c0_22, %c0_23], %27 {strides = array<i32>} : memref<16x128xf32, #tpu.memory_space<vmem>>, vector<16x128xf32>,
    } else {
    }
    return
  }
  func.func @transform_0(%arg0: i32, %arg1: i32) -> (i32, i32) {
    %c0_i32 = arith.constant 0 : i32
    return %arg0, %arg1 : i32, i32
  }
  func.func @transform_1(%arg0: i32, %arg1: i32) -> (i32, i32) {
    %c0_i32 = arith.constant 0 : i32
    return %arg0, %arg1 : i32, i32
  }
  func.func @transform_2(%arg0: i32, %arg1: i32) -> (i32, i32) {
    %c0_i32 = arith.constant 0 : i32
    %c0_i32_0 = arith.constant 0 : i32
    return %arg0, %c0_i32 : i32, i32
  }
  func.func @transform_3(%arg0: i32, %arg1: i32) -> (i32, i32) {
    %c0_i32 = arith.constant 0 : i32
    %c0_i32_0 = arith.constant 0 : i32
    return %arg1, %c0_i32 : i32, i32
  }
  func.func @transform_4(%arg0: i32, %arg1: i32) -> (i32, i32) {
    %c0_i32 = arith.constant 0 : i32
    %c0_i32_0 = arith.constant 0 : i32
    return %arg1, %c0_i32 : i32, i32
  }
  func.func @transform_5(%arg0: i32, %arg1: i32) -> (i32, i32) {
    %c0_i32 = arith.constant 0 : i32
    %c0_i32_0 = arith.constant 0 : i32
    %c0_i32_1 = arith.constant 0 : i32
    return %c0_i32, %c0_i32_0 : i32, i32
  }
  func.func @transform_6(%arg0: i32, %arg1: i32) -> (i32, i32) {
    %c0_i32 = arith.constant 0 : i32
    %c0_i32_0 = arith.constant 0 : i32
    %c0_i32_1 = arith.constant 0 : i32
    return %c0_i32, %c0_i32_0 : i32, i32
  }
  func.func @transform_7(%arg0: i32, %arg1: i32) -> (i32, i32) {
    %c0_i32 = arith.constant 0 : i32
    %c0_i32_0 = arith.constant 0 : i32
    %c0_i32_1 = arith.constant 0 : i32
    return %c0_i32, %c0_i32_0 : i32, i32
  }
  func.func @transform_8(%arg0: i32, %arg1: i32) -> (i32, i32) {
    %c0_i32 = arith.constant 0 : i32
    %c0_i32_0 = arith.constant 0 : i32
    return %arg0, %c0_i32 : i32, i32
  }
}

</mosaic_0001>

<llo_original>
// kernel: ensemble_forward.1
$region0: #{ensemble_forward.1}
  #allocation0 [shape = 'u32[]', space=smem, size = 0x4, offset = 0x4, fixed_abs, tag = 'smem constant byte address 0x4 - core index']
  #allocation1 [shape = 'u32[72,128]{1,0:T(1,128)}', space=vmem, size = 0x9000, scoped, tag = 'internal scratch']
  #allocation2 [shape = 'f32[16,128]{1,0:T(8,128)}', space=vmem, size = 0x2000, scoped, tag = 'scratch operand']
  %s0 = inlined_call_operand.vmem [shape: bf16[16,1024], index: 0, kind: input, shape index: {}]
  %s1 = inlined_call_operand.vmem [shape: bf16[16,1024], index: 1, kind: input, shape index: {}]
  %s2 = inlined_call_operand.vmem [shape: bf16[16,8], index: 2, kind: input, shape index: {}]
  %s3 = inlined_call_operand.vmem [shape: bf16[1024,128], index: 3, kind: input, shape index: {}]
  %s4 = inlined_call_operand.hbm [shape: bf16[1024,128], index: 4, kind: input, shape index: {}]
  %s5 = inlined_call_operand.vmem [shape: bf16[8,128], index: 5, kind: input, shape index: {}]
  %s6 = inlined_call_operand.vmem [shape: f32[1,128], index: 6, kind: input, shape index: {}]
  %s7 = inlined_call_operand.hbm [shape: bf16[128,128], index: 7, kind: input, shape index: {}]
  %s8 = inlined_call_operand.vmem [shape: f32[16,128], index: 8, kind: output, shape index: {}]
  %s9 = sld [smem:[#allocation0]]
  $region127: #{ensemble_forward.1} parent=0
    _
  %s11 = ssub.s32 1, %s9
  %s12 = scalar_select 0, %s11, %s9
  $region1: #{ensemble_forward.1} parent=0
    #allocation3 [shape = 'u8[32768]{0}', space=vmem, size = 0x8000, scoped, tag = 'input window, operand 0']
    #allocation4 [shape = 'u8[32768]{0}', space=vmem, size = 0x8000, scoped, tag = 'input window, operand 1']
    #allocation5 [shape = 'u8[262144]{0}', space=vmem, size = 0x40000, scoped, tag = 'input window, operand 4']
    #allocation6 [shape = 's32[2]{0}', space=sflag, size = 0x8, scoped, tag = 'scoped memory for ensemble_forward.1']
    #allocation7 [shape = 'u8[32768]{0}', space=vmem, size = 0x8000, scoped, tag = 'input window, operand 7, single buffered']
    #allocation8 [shape = 's32[1]{0}', space=sflag, size = 0x4, scoped, tag = 'scoped memory for ensemble_forward.1']
    %13 = vsyncpa [#allocation6], 0
    %s14 = scalar_lea.sflag [#allocation6], 1
    %15 = vsyncpa %s14, 0
    %16 = vsyncpa [#allocation8], 0
    loop: start=0, step=1, limit=4
    $region2: #{ensemble_forward.1} parent=1 // loop_pre_header
      _
    $region3: #{ensemble_forward.1} parent=1 // loop_header
      %s18 = sphi 0, %s22
      %p19 = scmp.ge.s32.totalorder %s18, 4
      %s25 = sphi 0, %s37
      %s26 = sphi 0, %s33
      %s27 = sphi 0, %s25
      %s28 = sphi 0, %s26
      %s29 = sphi 0, %s27
      %s30 = sphi 0, %s28
      %s42 = sphi 0, %s44
      %s45 = sphi 0, %s42
      %s46 = sphi 0, %s45
      %s62 = sphi 0, %s46
      %s70 = sphi 0, %s72
      %s73 = sphi 0, %s70
      %s74 = sphi 0, %s73
      %s90 = sphi 0, %s74
      %s96 = sphi 0, %s98
      %s99 = sphi 0, %s96
      %s100 = sphi 0, %s99
      %s116 = sphi 0, %s100
      %s122 = sphi 0, %s124
      %s125 = sphi 0, %s122
      %s126 = sphi 0, %s125
      %s142 = sphi 0, %s126
      %s148 = sphi 0, %s150
      %s151 = sphi 0, %s148
      %s152 = sphi 0, %s151
      %s168 = sphi 0, %s152
      %s172 = sphi 0, %s172
      %s174 = sphi 0, %s172
      %s175 = sphi 0, %s174
      %s189 = sphi 0, %s175
      %s193 = sphi 0, %s193
      %s195 = sphi 0, %s193
      %s196 = sphi 0, %s195
      %s210 = sphi 0, %s196
      %s214 = sphi 0, %s214
      %s216 = sphi 0, %s214
      %s217 = sphi 0, %s216
      %s231 = sphi 0, %s217
      %s237 = sphi 0, %s239
      %s240 = sphi 0, %s237
      %s241 = sphi 0, %s240
      %s257 = sphi 0, %s241
    $region4: #{ensemble_forward.1} parent=1 // loop_header_branch
      %21 = sbr.rel (%p19) target = $region8
    $region5: #{ensemble_forward.1} parent=1 // loop_body
      %s23 = ssub.s32 %s18, 1
      %s24 = ssub.s32 %s18, 2
      %s31 = sadd.s32 1, %s26
      %p32 = scmp.ge.s32.totalorder %s31, 2
      %s33 = scalar_select %p32, 0, %s31
      %s34 = sadd.s32 1, %s25
      %s35 = scalar_select %p32, %s34, %s25
      %p36 = scmp.ge.s32.totalorder %s35, 1
      %s37 = scalar_select %p36, 0, %s35
      %s38 = ssub.s32 %s25, %s37
      %s39 = ssub.s32 %s26, %s33
      %s40 = sor.u32 %s38, %s39
      %p41 = scmp.eq.s32.totalorder %s40, 0
      %s43 = sadd.s32 %s42, 1
      %s44 = scalar_select %p41, %s42, %s43
      %p47 = pneg %p41
      %p48 = scmp.eq.s32.totalorder %s18, 1
      %p49 = por %p47, %p48
      %p50 = scmp.ne.s32.totalorder %s42, %s45
      %p51 = scmp.eq.s32.totalorder %s18, 0
      %p52 = por %p50, %p51
      %p53 = scmp.ne.s32.totalorder %s42, %s45
      %p54 = scmp.eq.s32.totalorder %s23, 1
      %p55 = por %p53, %p54
      %p56 = scmp.ne.s32.totalorder %s45, %s46
      %p57 = scmp.eq.s32.totalorder %s23, 0
      %p58 = por %p56, %p57
      %p59 = scmp.ne.s32.totalorder %s45, %s46
      %p60 = scmp.eq.s32.totalorder %s24, 1
      %p61 = por %p59, %p60
      %p63 = scmp.ne.s32.totalorder %s46, %s62
      %p64 = scmp.eq.s32.totalorder %s24, 0
      %p65 = por %p63, %p64
      %s66 = ssub.s32 %s25, %s37
      %s67 = ssub.s32 %s26, %s33
      %s68 = sor.u32 %s66, %s67
      %p69 = scmp.eq.s32.totalorder %s68, 0
      %s71 = sadd.s32 %s70, 1
      %s72 = scalar_select %p69, %s70, %s71
      %p75 = pneg %p69
      %p76 = scmp.eq.s32.totalorder %s18, 1
      %p77 = por %p75, %p76
      %p78 = scmp.ne.s32.totalorder %s70, %s73
      %p79 = scmp.eq.s32.totalorder %s18, 0
      %p80 = por %p78, %p79
      %p81 = scmp.ne.s32.totalorder %s70, %s73
      %p82 = scmp.eq.s32.totalorder %s23, 1
      %p83 = por %p81, %p82
      %p84 = scmp.ne.s32.totalorder %s73, %s74
      %p85 = scmp.eq.s32.totalorder %s23, 0
      %p86 = por %p84, %p85
      %p87 = scmp.ne.s32.totalorder %s73, %s74
      %p88 = scmp.eq.s32.totalorder %s24, 1
      %p89 = por %p87, %p88
      %p91 = scmp.ne.s32.totalorder %s74, %s90
      %p92 = scmp.eq.s32.totalorder %s24, 0
      %p93 = por %p91, %p92
      %s94 = ssub.s32 %s25, %s37
      %p95 = scmp.eq.s32.totalorder %s94, 0
      %s97 = sadd.s32 %s96, 1
      %s98 = scalar_select %p95, %s96, %s97
      %p101 = pneg %p95
      %p102 = scmp.eq.s32.totalorder %s18, 1
      %p103 = por %p101, %p102
      %p104 = scmp.ne.s32.totalorder %s96, %s99
      %p105 = scmp.eq.s32.totalorder %s18, 0
      %p106 = por %p104, %p105
      %p107 = scmp.ne.s32.totalorder %s96, %s99
      %p108 = scmp.eq.s32.totalorder %s23, 1
      %p109 = por %p107, %p108
      %p110 = scmp.ne.s32.totalorder %s99, %s100
      %p111 = scmp.eq.s32.totalorder %s23, 0
      %p112 = por %p110, %p111
      %p113 = scmp.ne.s32.totalorder %s99, %s100
      %p114 = scmp.eq.s32.totalorder %s24, 1
      %p115 = por %p113, %p114
      %p117 = scmp.ne.s32.totalorder %s100, %s116
      %p118 = scmp.eq.s32.totalorder %s24, 0
      %p119 = por %p117, %p118
      %s120 = ssub.s32 %s26, %s33
      %p121 = scmp.eq.s32.totalorder %s120, 0
      %s123 = sadd.s32 %s122, 1
      %s124 = scalar_select %p121, %s122, %s123
      %p127 = pneg %p121
      %p128 = scmp.eq.s32.totalorder %s18, 1
      %p129 = por %p127, %p128
      %p130 = scmp.ne.s32.totalorder %s122, %s125
      %p131 = scmp.eq.s32.totalorder %s18, 0
      %p132 = por %p130, %p131
      %p133 = scmp.ne.s32.totalorder %s122, %s125
      %p134 = scmp.eq.s32.totalorder %s23, 1
      %p135 = por %p133, %p134
      %p136 = scmp.ne.s32.totalorder %s125, %s126
      %p137 = scmp.eq.s32.totalorder %s23, 0
      %p138 = por %p136, %p137
      %p139 = scmp.ne.s32.totalorder %s125, %s126
      %p140 = scmp.eq.s32.totalorder %s24, 1
      %p141 = por %p139, %p140
      %p143 = scmp.ne.s32.totalorder %s126, %s142
      %p144 = scmp.eq.s32.totalorder %s24, 0
      %p145 = por %p143, %p144
      %s146 = ssub.s32 %s26, %s33
      %p147 = scmp.eq.s32.totalorder %s146, 0
      %s149 = sadd.s32 %s148, 1
      %s150 = scalar_select %p147, %s148, %s149
      %p153 = pneg %p147
      %p154 = scmp.eq.s32.totalorder %s18, 1
      %p155 = por %p153, %p154
      %p156 = scmp.ne.s32.totalorder %s148, %s151
      %p157 = scmp.eq.s32.totalorder %s18, 0
      %p158 = por %p156, %p157
      %p159 = scmp.ne.s32.totalorder %s148, %s151
      %p160 = scmp.eq.s32.totalorder %s23, 1
      %p161 = por %p159, %p160
      %p162 = scmp.ne.s32.totalorder %s151, %s152
      %p163 = scmp.eq.s32.totalorder %s23, 0
      %p164 = por %p162, %p163
      %p165 = scmp.ne.s32.totalorder %s151, %s152
      %p166 = scmp.eq.s32.totalorder %s24, 1
      %p167 = por %p165, %p166
      %p169 = scmp.ne.s32.totalorder %s152, %s168
      %p170 = scmp.eq.s32.totalorder %s24, 0
      %p171 = por %p169, %p170
      %s173 = sadd.s32 %s172, 1
      %p176 = scmp.eq.s32.totalorder %s18, 1
      %p177 = scmp.ne.s32.totalorder %s172, %s174
      %p178 = scmp.eq.s32.totalorder %s18, 0
      %p179 = por %p177, %p178
      %p180 = scmp.ne.s32.totalorder %s172, %s174
      %p181 = scmp.eq.s32.totalorder %s23, 1
      %p182 = por %p180, %p181
      %p183 = scmp.ne.s32.totalorder %s174, %s175
      %p184 = scmp.eq.s32.totalorder %s23, 0
      %p185 = por %p183, %p184
      %p186 = scmp.ne.s32.totalorder %s174, %s175
      %p187 = scmp.eq.s32.totalorder %s24, 1
      %p188 = por %p186, %p187
      %p190 = scmp.ne.s32.totalorder %s175, %s189
      %p191 = scmp.eq.s32.totalorder %s24, 0
      %p192 = por %p190, %p191
      %s194 = sadd.s32 %s193, 1
      %p197 = scmp.eq.s32.totalorder %s18, 1
      %p198 = scmp.ne.s32.totalorder %s193, %s195
      %p199 = scmp.eq.s32.totalorder %s18, 0
      %p200 = por %p198, %p199
      %p201 = scmp.ne.s32.totalorder %s193, %s195
      %p202 = scmp.eq.s32.totalorder %s23, 1
      %p203 = por %p201, %p202
      %p204 = scmp.ne.s32.totalorder %s195, %s196
      %p205 = scmp.eq.s32.totalorder %s23, 0
      %p206 = por %p204, %p205
      %p207 = scmp.ne.s32.totalorder %s195, %s196
      %p208 = scmp.eq.s32.totalorder %s24, 1
      %p209 = por %p207, %p208
      %p211 = scmp.ne.s32.totalorder %s196, %s210
      %p212 = scmp.eq.s32.totalorder %s24, 0
      %p213 = por %p211, %p212
      %s215 = sadd.s32 %s214, 1
      %p218 = scmp.eq.s32.totalorder %s18, 1
      %p219 = scmp.ne.s32.totalorder %s214, %s216
      %p220 = scmp.eq.s32.totalorder %s18, 0
      %p221 = por %p219, %p220
      %p222 = scmp.ne.s32.totalorder %s214, %s216
      %p223 = scmp.eq.s32.totalorder %s23, 1
      %p224 = por %p222, %p223
      %p225 = scmp.ne.s32.totalorder %s216, %s217
      %p226 = scmp.eq.s32.totalorder %s23, 0
      %p227 = por %p225, %p226
      %p228 = scmp.ne.s32.totalorder %s216, %s217
      %p229 = scmp.eq.s32.totalorder %s24, 1
      %p230 = por %p228, %p229
      %p232 = scmp.ne.s32.totalorder %s217, %s231
      %p233 = scmp.eq.s32.totalorder %s24, 0
      %p234 = por %p232, %p233
      %s235 = ssub.s32 %s25, %s37
      %p236 = scmp.eq.s32.totalorder %s235, 0
      %s238 = sadd.s32 %s237, 1
      %s239 = scalar_select %p236, %s237, %s238
      %p242 = pneg %p236
      %p243 = scmp.eq.s32.totalorder %s18, 1
      %p244 = por %p242, %p243
      %p245 = scmp.ne.s32.totalorder %s237, %s240
      %p246 = scmp.eq.s32.totalorder %s18, 0
      %p247 = por %p245, %p246
      %p248 = scmp.ne.s32.totalorder %s237, %s240
      %p249 = scmp.eq.s32.totalorder %s23, 1
      %p250 = por %p248, %p249
      %p251 = scmp.ne.s32.totalorder %s240, %s241
      %p252 = scmp.eq.s32.totalorder %s23, 0
      %p253 = por %p251, %p252
      %p254 = scmp.ne.s32.totalorder %s240, %s241
      %p255 = scmp.eq.s32.totalorder %s24, 1
      %p256 = por %p254, %p255
      %p258 = scmp.ne.s32.totalorder %s241, %s257
      %p259 = scmp.eq.s32.totalorder %s24, 0
      %p260 = por %p258, %p259
      %p261 = scmp.le.s32.totalorder 1, %s18
      %p262 = scmp.lt.s32.totalorder %s18, 3
      %p263 = pnand %p261, %p262
      %p264 = pneg %p263
      // Predicated region
      $region9: #{ensemble_forward.1} parent=5 // pred_check
        _
      $region10: #{ensemble_forward.1} parent=5 // pred_check_branch
        %266 = sbr.rel (%p263) target = $region12
      $region11: #{ensemble_forward.1} parent=5 // pred_region
        %s267 = ssub.s32 %s18, 1
        // Predicated region
        $region13: #{ensemble_forward.1} parent=11 // pred_check
          %p268 = pneg %p112
        $region14: #{ensemble_forward.1} parent=11 // pred_check_branch
          %270 = sbr.rel (%p268) target = $region16
        $region15: #{ensemble_forward.1} parent=11 // pred_region
          %s271 = smul.u32 2, %s27
          %p272 = scmp.lt.s32.totalorder %s271, 1
          %s273 = scalar_select %p272, %s271, 1
          %s274 = smul.addr %s273, 4
          %s275 = scalar_lea.vmem %s2, %s274
          %s276 = smul.u32 2, %s27
        $region16: #{ensemble_forward.1} parent=11 // pred_fallthru
          _
        // Predicated region
        $region17: #{ensemble_forward.1} parent=11 // pred_check
          %p277 = pneg %p185
        $region18: #{ensemble_forward.1} parent=11 // pred_check_branch
          %279 = sbr.rel (%p277) target = $region20
        $region19: #{ensemble_forward.1} parent=11 // pred_region
          _
        $region20: #{ensemble_forward.1} parent=11 // pred_fallthru
          _
        // Predicated region
        $region21: #{ensemble_forward.1} parent=11 // pred_check
          %p280 = pneg %p206
        $region22: #{ensemble_forward.1} parent=11 // pred_check_branch
          %282 = sbr.rel (%p280) target = $region24
        $region23: #{ensemble_forward.1} parent=11 // pred_region
          _
        $region24: #{ensemble_forward.1} parent=11 // pred_fallthru
          _
        // Predicated region
        $region25: #{ensemble_forward.1} parent=11 // pred_check
          %p283 = pneg %p227
        $region26: #{ensemble_forward.1} parent=11 // pred_check_branch
          %285 = sbr.rel (%p283) target = $region28
        $region27: #{ensemble_forward.1} parent=11 // pred_region
          %287 = vsyncadd [#allocation8], 0
          %s288 = sshll.u32 %s7, 4
          %s289 = int_to_ptr.hbm [resolvable:$true] %s288
          %s290 = sshll.u32 [#allocation7], 4
          %s291 = int_to_ptr.vmem [resolvable:$true] %s290
          %296 = dma.hbm_to_vmem [thread:$0]  %s289, 1024, %s291, [#allocation8], 64, 64, 4
        $region28: #{ensemble_forward.1} parent=11 // pred_fallthru
          _
      $region12: #{ensemble_forward.1} parent=5 // pred_fallthru
        _
      %p297 = scmp.lt.s32.totalorder %s18, 2
      // Predicated region
      $region29: #{ensemble_forward.1} parent=5 // pred_check
        %p298 = pneg %p297
      $region30: #{ensemble_forward.1} parent=5 // pred_check_branch
        %300 = sbr.rel (%p298) target = $region32
      $region31: #{ensemble_forward.1} parent=5 // pred_region
        // Predicated region
        $region33: #{ensemble_forward.1} parent=31 // pred_check
          %p301 = pneg %p52
        $region34: #{ensemble_forward.1} parent=31 // pred_check_branch
          %303 = sbr.rel (%p301) target = $region36
        $region35: #{ensemble_forward.1} parent=31 // pred_region
          %s304 = sand.u32 %s42, 1
          %s305 = sand.u32 %s42, 1
          %s306 = smul.addr %s305, 32
          %s307 = scalar_lea.vmem [#allocation3], %s306
          %s308 = smul.u32 2, %s25
          %s309 = smul.u32 4, %s26
          %s310 = smul.addr %s308, 8
          %s311 = sadd.s32 %s309, %s310
          %s312 = smul.addr %s311, 4
          %s313 = scalar_lea.vmem %s0, %s312
          // Predicated region
          $region37: #{ensemble_forward.1} parent=35 // pred_check
            _
          $region38: #{ensemble_forward.1} parent=35 // pred_check_branch
            %315 = sbr.rel (0) target = $region40
          $region39: #{ensemble_forward.1} parent=35 // pred_region
            // Predicated region
            $region41: #{ensemble_forward.1} parent=39 // pred_check
              _
            $region42: #{ensemble_forward.1} parent=39 // pred_check_branch
              %317 = sbr.rel (0) target = $region44
            $region43: #{ensemble_forward.1} parent=39 // pred_region
              loop: start=0, step=1, limit=1
              $region45: #{ensemble_forward.1} parent=43 // loop_pre_header
                _
              $region46: #{ensemble_forward.1} parent=43 // loop_header
                %s319 = sphi 0, %s323
                %p320 = scmp.ge.s32.totalorder %s319, 1
                %s324 = sphi %s313, %s313
                %s325 = sphi %s307, %s307
              $region47: #{ensemble_forward.1} parent=43 // loop_header_branch
                %322 = sbr.rel (%p320) target = $region51
              $region48: #{ensemble_forward.1} parent=43 // loop_body
                %v326 = vld [vmem:[%s324] sm:$0xff]
                %327 = vst [vmem:[%s325] sm:$0xff] %v326
                %v328 = vld [vmem:[%s324 + $0x8] sm:$0xff]
                %329 = vst [vmem:[%s325 + $0x8] sm:$0xff] %v328
                %v330 = vld [vmem:[%s324 + $0x20] sm:$0xff]
                %331 = vst [vmem:[%s325 + $0x10] sm:$0xff] %v330
                %v332 = vld [vmem:[%s324 + $0x28] sm:$0xff]
                %333 = vst [vmem:[%s325 + $0x18] sm:$0xff] %v332
              $region49: #{ensemble_forward.1} parent=43 // loop_footer
                %s323 = sadd.s32 1, %s319
              $region50: #{ensemble_forward.1} parent=43 // loop_footer_branch
                %318 = sbr.rel target = $region46
              $region51: #{ensemble_forward.1} parent=43 // loop_exit
                _
            $region44: #{ensemble_forward.1} parent=39 // pred_fallthru
              _
            // Predicated region
            $region52: #{ensemble_forward.1} parent=39 // pred_check
              _
            $region53: #{ensemble_forward.1} parent=39 // pred_check_branch
              %335 = sbr.rel target = $region55
            $region54: #{ensemble_forward.1} parent=39 // pred_region
              _
            $region55: #{ensemble_forward.1} parent=39 // pred_fallthru
              _
          $region40: #{ensemble_forward.1} parent=35 // pred_fallthru
            _
          %336 = vnop
        $region36: #{ensemble_forward.1} parent=31 // pred_fallthru
          _
        // Predicated region
        $region56: #{ensemble_forward.1} parent=31 // pred_check
          %p337 = pneg %p80
        $region57: #{ensemble_forward.1} parent=31 // pred_check_branch
          %339 = sbr.rel (%p337) target = $region59
        $region58: #{ensemble_forward.1} parent=31 // pred_region
          %s340 = sand.u32 %s70, 1
          %s341 = sand.u32 %s70, 1
          %s342 = smul.addr %s341, 32
          %s343 = scalar_lea.vmem [#allocation4], %s342
          %s344 = smul.u32 2, %s25
          %s345 = smul.u32 4, %s26
          %s346 = smul.addr %s344, 8
          %s347 = sadd.s32 %s345, %s346
          %s348 = smul.addr %s347, 4
          %s349 = scalar_lea.vmem %s1, %s348
          // Predicated region
          $region60: #{ensemble_forward.1} parent=58 // pred_check
            _
          $region61: #{ensemble_forward.1} parent=58 // pred_check_branch
            %351 = sbr.rel (0) target = $region63
          $region62: #{ensemble_forward.1} parent=58 // pred_region
            // Predicated region
            $region64: #{ensemble_forward.1} parent=62 // pred_check
              _
            $region65: #{ensemble_forward.1} parent=62 // pred_check_branch
              %353 = sbr.rel (0) target = $region67
            $region66: #{ensemble_forward.1} parent=62 // pred_region
              loop: start=0, step=1, limit=1
              $region68: #{ensemble_forward.1} parent=66 // loop_pre_header
                _
              $region69: #{ensemble_forward.1} parent=66 // loop_header
                %s355 = sphi 0, %s359
                %p356 = scmp.ge.s32.totalorder %s355, 1
                %s360 = sphi %s349, %s349
                %s361 = sphi %s343, %s343
              $region70: #{ensemble_forward.1} parent=66 // loop_header_branch
                %358 = sbr.rel (%p356) target = $region74
              $region71: #{ensemble_forward.1} parent=66 // loop_body
                %v362 = vld [vmem:[%s360] sm:$0xff]
                %363 = vst [vmem:[%s361] sm:$0xff] %v362
                %v364 = vld [vmem:[%s360 + $0x8] sm:$0xff]
                %365 = vst [vmem:[%s361 + $0x8] sm:$0xff] %v364
                %v366 = vld [vmem:[%s360 + $0x20] sm:$0xff]
                %367 = vst [vmem:[%s361 + $0x10] sm:$0xff] %v366
                %v368 = vld [vmem:[%s360 + $0x28] sm:$0xff]
                %369 = vst [vmem:[%s361 + $0x18] sm:$0xff] %v368
              $region72: #{ensemble_forward.1} parent=66 // loop_footer
                %s359 = sadd.s32 1, %s355
              $region73: #{ensemble_forward.1} parent=66 // loop_footer_branch
                %354 = sbr.rel target = $region69
              $region74: #{ensemble_forward.1} parent=66 // loop_exit
                _
            $region67: #{ensemble_forward.1} parent=62 // pred_fallthru
              _
            // Predicated region
            $region75: #{ensemble_forward.1} parent=62 // pred_check
              _
            $region76: #{ensemble_forward.1} parent=62 // pred_check_branch
              %371 = sbr.rel target = $region78
            $region77: #{ensemble_forward.1} parent=62 // pred_region
              _
            $region78: #{ensemble_forward.1} parent=62 // pred_fallthru
              _
          $region63: #{ensemble_forward.1} parent=58 // pred_fallthru
            _
          %372 = vnop
        $region59: #{ensemble_forward.1} parent=31 // pred_fallthru
          _
        // Predicated region
        $region79: #{ensemble_forward.1} parent=31 // pred_check
          %p373 = pneg %p132
        $region80: #{ensemble_forward.1} parent=31 // pred_check_branch
          %375 = sbr.rel (%p373) target = $region82
        $region81: #{ensemble_forward.1} parent=31 // pred_region
          %s376 = smul.u32 64, %s26
          %p377 = scmp.lt.s32.totalorder %s376, 127
          %s378 = scalar_select %p377, %s376, 127
          %s379 = smul.addr %s378, 4
          %s380 = scalar_lea.vmem %s3, %s379
          %s381 = smul.u32 64, %s26
        $region82: #{ensemble_forward.1} parent=31 // pred_fallthru
          _
        // Predicated region
        $region83: #{ensemble_forward.1} parent=31 // pred_check
          %p382 = pneg %p158
        $region84: #{ensemble_forward.1} parent=31 // pred_check_branch
          %384 = sbr.rel (%p382) target = $region86
        $region85: #{ensemble_forward.1} parent=31 // pred_region
          %s385 = sand.u32 %s148, 1
          %s386 = scalar_lea.sflag [#allocation6], %s385
          %s387 = sand.u32 %s148, 1
          %s388 = smul.addr %s387, 256
          %s389 = scalar_lea.vmem [#allocation5], %s388
          %s390 = smul.u32 64, %s26
          %392 = vsyncadd %s386, 0
          %s393 = smul.addr %s390, 4
          %s394 = scalar_lea.hbm %s4, %s393
          %s395 = sshll.u32 %s394, 4
          %s396 = int_to_ptr.hbm [resolvable:$true] %s395
          %s397 = sshll.u32 %s389, 4
          %s398 = int_to_ptr.vmem [resolvable:$true] %s397
          %403 = dma.hbm_to_vmem [thread:$0]  %s396, 4096, %s398, %s386, 64, 64, 4
        $region86: #{ensemble_forward.1} parent=31 // pred_fallthru
          _
      $region32: #{ensemble_forward.1} parent=5 // pred_fallthru
        _
      %p404 = scmp.le.s32.totalorder 1, %s18
      %p405 = scmp.lt.s32.totalorder %s18, 3
      %p406 = pnand %p404, %p405
      %p407 = pneg %p406
      // Predicated region
      $region87: #{ensemble_forward.1} parent=5 // pred_check
        _
      $region88: #{ensemble_forward.1} parent=5 // pred_check_branch
        %409 = sbr.rel (%p406) target = $region90
      $region89: #{ensemble_forward.1} parent=5 // pred_region
        %s410 = ssub.s32 %s18, 1
        %s411 = sand.u32 %s45, 1
        %s412 = sand.u32 %s45, 1
        %s413 = smul.addr %s412, 32
        %s414 = scalar_lea.vmem [#allocation3], %s413
        // Predicated region
        $region91: #{ensemble_forward.1} parent=89 // pred_check
          %p415 = pneg %p58
        $region92: #{ensemble_forward.1} parent=89 // pred_check_branch
          %417 = sbr.rel (%p415) target = $region94
        $region93: #{ensemble_forward.1} parent=89 // pred_region
          _
        $region94: #{ensemble_forward.1} parent=89 // pred_fallthru
          _
        %s418 = sand.u32 %s73, 1
        %s419 = sand.u32 %s73, 1
        %s420 = smul.addr %s419, 32
        %s421 = scalar_lea.vmem [#allocation4], %s420
        // Predicated region
        $region95: #{ensemble_forward.1} parent=89 // pred_check
          %p422 = pneg %p86
        $region96: #{ensemble_forward.1} parent=89 // pred_check_branch
          %424 = sbr.rel (%p422) target = $region98
        $region97: #{ensemble_forward.1} parent=89 // pred_region
          _
        $region98: #{ensemble_forward.1} parent=89 // pred_fallthru
          _
        %s425 = sand.u32 %s151, 1
        %s426 = scalar_lea.sflag [#allocation6], %s425
        %s427 = sand.u32 %s151, 1
        %s428 = smul.addr %s427, 256
        %s429 = scalar_lea.vmem [#allocation5], %s428
        // Predicated region
        $region99: #{ensemble_forward.1} parent=89 // pred_check
          %p430 = pneg %p164
        $region100: #{ensemble_forward.1} parent=89 // pred_check_branch
          %432 = sbr.rel (%p430) target = $region102
        $region101: #{ensemble_forward.1} parent=89 // pred_region
          %434 = dma.done %s426, 4096
        $region102: #{ensemble_forward.1} parent=89 // pred_fallthru
          _
        // Predicated region
        $region103: #{ensemble_forward.1} parent=89 // pred_check
          %p435 = pneg %p227
        $region104: #{ensemble_forward.1} parent=89 // pred_check_branch
          %437 = sbr.rel (%p435) target = $region106
        $region105: #{ensemble_forward.1} parent=89 // pred_region
          %439 = dma.done [#allocation8], 1024
        $region106: #{ensemble_forward.1} parent=89 // pred_fallthru
          _
        %s440 = sand.u32 %s45, 1
        %s441 = sand.u32 %s45, 1
        %s442 = smul.addr %s441, 32
        %s443 = scalar_lea.vmem [#allocation3], %s442
        %p444 = pneg %p58
        %p445 = pneg %p55
        %s446 = sand.u32 %s73, 1
        %s447 = sand.u32 %s73, 1
        %s448 = smul.addr %s447, 32
        %s449 = scalar_lea.vmem [#allocation4], %s448
        %p450 = pneg %p86
        %p451 = pneg %p83
        %s452 = smul.u32 2, %s27
        %p453 = scmp.lt.s32.totalorder %s452, 1
        %s454 = scalar_select %p453, %s452, 1
        %s455 = smul.addr %s454, 4
        %s456 = scalar_lea.vmem %s2, %s455
        %p457 = pneg %p112
        %p458 = pneg %p109
        %s459 = smul.u32 64, %s28
        %p460 = scmp.lt.s32.totalorder %s459, 127
        %s461 = scalar_select %p460, %s459, 127
        %s462 = smul.addr %s461, 4
        %s463 = scalar_lea.vmem %s3, %s462
        %p464 = pneg %p138
        %p465 = pneg %p135
        %s466 = sand.u32 %s151, 1
        %s467 = scalar_lea.sflag [#allocation6], %s466
        %s468 = sand.u32 %s151, 1
        %s469 = smul.addr %s468, 256
        %s470 = scalar_lea.vmem [#allocation5], %s469
        %p471 = pneg %p164
        %p472 = pneg %p161
        %p473 = pneg %p185
        %p474 = pneg %p182
        %p475 = pneg %p206
        %p476 = pneg %p203
        %p477 = pneg %p227
        %p478 = pneg %p224
        %p479 = pneg %p253
        %p480 = pneg %p250
        %s481 = smul.u32 2, %s27
        %p482 = scmp.lt.s32.totalorder %s481, 1
        %s483 = scalar_select %p482, %s481, 1
        %s484 = smul.addr %s483, 8
        %s485 = scalar_lea.vmem %s8, %s484
        %s486 = smul.u32 2, %s27
        %s487 = smul.u32 4, %s28
        %s488 = smul.u32 2, %s27
        %s489 = smul.u32 4, %s28
        %s490 = smul.u32 2, %s27
        %p491 = scmp.lt.s32.totalorder %s490, 1
        %s492 = scalar_select %p491, %s490, 1
        %s493 = smul.addr %s492, 4
        %s494 = scalar_lea.vmem %s2, %s493
        %s495 = smul.u32 2, %s27
        %s496 = smul.u32 64, %s28
        %p497 = scmp.lt.s32.totalorder %s496, 127
        %s498 = scalar_select %p497, %s496, 127
        %s499 = smul.addr %s498, 4
        %s500 = scalar_lea.vmem %s3, %s499
        %s501 = smul.u32 64, %s28
        %s502 = smul.u32 64, %s28
        %s503 = smul.u32 2, %s27
        %p504 = scmp.lt.s32.totalorder %s503, 1
        %s505 = scalar_select %p504, %s503, 1
        %s506 = smul.addr %s505, 8
        %s507 = scalar_lea.vmem %s8, %s506
        %s508 = smul.u32 2, %s27
        %p510 = scmp.eq.s32.totalorder %s28, 0
        // Predicated region
        $region107: #{ensemble_forward.1} parent=89 // pred_check
          %p511 = pneg %p510
        $region108: #{ensemble_forward.1} parent=89 // pred_check_branch
          %513 = sbr.rel (%p511) target = $region110
        $region109: #{ensemble_forward.1} parent=89 // pred_region
          %v514 = vld [vmem:[%s494] sm:$0xf]
          %v515 = vld [vmem:[%s494 + $0x4] sm:$0xf]
          %v516 = vld [vmem:[%s5] sm:$0xf]
          %v519 = vunpack.c.l.b16 %v514
          %v520 = vunpack.c.l.b16 %v515
          %v521 = vpack.c.b16 %v520, %v519
          %vm522 = vcmask 64512
          %v524 = vsel %vm522, %v521, 0
          %vm526 = vcmask 1043456
          %v528 = vsel %vm526, %v516, 0
          %530 = vmatpush.bf16.msra.mxu0 0
          %531 = vmatpush.bf16.msra.mxu0 0
          %532 = vmatpush.bf16.msra.mxu0 0
          %533 = vmatpush.bf16.msra.mxu0 0
          %534 = vmatpush.bf16.msra.mxu0 0
          %535 = vmatpush.bf16.msra.mxu0 0
          %536 = vmatpush.bf16.msra.mxu0 0
          %537 = vmatpush.bf16.msra.mxu0 %v528
          %538 = vmatmul.bf16.gmra.mxu0 %v524
          %v539 = vpop.f32.mrf.mxu0
          %v540 = vadd.f32 0.0, %v539
          %v541 = vpop.f32.mrf.mxu0
          %v542 = vadd.f32 0.0, %v541
          %543 = vdwg.mxu0
          %544 = vst [vmem:[#allocation2] sm:$0xff] %v540
          %545 = vst [vmem:[#allocation2 + $0x8] sm:$0xff] %v542
        $region110: #{ensemble_forward.1} parent=89 // pred_fallthru
          _
        %v546 = vld [vmem:[#allocation2] sm:$0xff]
        %v547 = vld [vmem:[#allocation2 + $0x8] sm:$0xff]
        %v548 = vld [vmem:[%s414] sm:$0xff]
        %v549 = vld [vmem:[%s414 + $0x8] sm:$0xff]
        %v550 = vld [vmem:[%s414 + $0x10] sm:$0xff]
        %v551 = vld [vmem:[%s414 + $0x18] sm:$0xff]
        %v552 = vld [vmem:[%s500] sm:$0xf]
        %v553 = vld [vmem:[%s500 + $0x4] sm:$0xf]
        %v554 = vld [vmem:[%s500 + $0x8] sm:$0xf]
        %v555 = vld [vmem:[%s500 + $0xc] sm:$0xf]
        %v556 = vld [vmem:[%s500 + $0x10] sm:$0xf]
        %v557 = vld [vmem:[%s500 + $0x14] sm:$0xf]
        %v558 = vld [vmem:[%s500 + $0x18] sm:$0xf]
        %v559 = vld [vmem:[%s500 + $0x1c] sm:$0xf]
        %v560 = vld [vmem:[%s500 + $0x20] sm:$0xf]
        %v561 = vld [vmem:[%s500 + $0x24] sm:$0xf]
        %v562 = vld [vmem:[%s500 + $0x28] sm:$0xf]
        %v563 = vld [vmem:[%s500 + $0x2c] sm:$0xf]
        %v564 = vld [vmem:[%s500 + $0x30] sm:$0xf]
        %v565 = vld [vmem:[%s500 + $0x34] sm:$0xf]
        %v566 = vld [vmem:[%s500 + $0x38] sm:$0xf]
        %v567 = vld [vmem:[%s500 + $0x3c] sm:$0xf]
        %v568 = vld [vmem:[%s500 + $0x40] sm:$0xf]
        %v569 = vld [vmem:[%s500 + $0x44] sm:$0xf]
        %v570 = vld [vmem:[%s500 + $0x48] sm:$0xf]
        %v571 = vld [vmem:[%s500 + $0x4c] sm:$0xf]
        %v572 = vld [vmem:[%s500 + $0x50] sm:$0xf]
        %v573 = vld [vmem:[%s500 + $0x54] sm:$0xf]
        %v574 = vld [vmem:[%s500 + $0x58] sm:$0xf]
        %v575 = vld [vmem:[%s500 + $0x5c] sm:$0xf]
        %v576 = vld [vmem:[%s500 + $0x60] sm:$0xf]
        %v577 = vld [vmem:[%s500 + $0x64] sm:$0xf]
        %v578 = vld [vmem:[%s500 + $0x68] sm:$0xf]
        %v579 = vld [vmem:[%s500 + $0x6c] sm:$0xf]
        %v580 = vld [vmem:[%s500 + $0x70] sm:$0xf]
        %v581 = vld [vmem:[%s500 + $0x74] sm:$0xf]
        %v582 = vld [vmem:[%s500 + $0x78] sm:$0xf]
        %v583 = vld [vmem:[%s500 + $0x7c] sm:$0xf]
        %v584 = vld [vmem:[%s500 + $0x80] sm:$0xf]
        %v585 = vld [vmem:[%s500 + $0x84] sm:$0xf]
        %v586 = vld [vmem:[%s500 + $0x88] sm:$0xf]
        %v587 = vld [vmem:[%s500 + $0x8c] sm:$0xf]
        %v588 = vld [vmem:[%s500 + $0x90] sm:$0xf]
        %v589 = vld [vmem:[%s500 + $0x94] sm:$0xf]
        %v590 = vld [vmem:[%s500 + $0x98] sm:$0xf]
        %v591 = vld [vmem:[%s500 + $0x9c] sm:$0xf]
        %v592 = vld [vmem:[%s500 + $0xa0] sm:$0xf]
        %v593 = vld [vmem:[%s500 + $0xa4] sm:$0xf]
        %v594 = vld [vmem:[%s500 + $0xa8] sm:$0xf]
        %v595 = vld [vmem:[%s500 + $0xac] sm:$0xf]
        %v596 = vld [vmem:[%s500 + $0xb0] sm:$0xf]
        %v597 = vld [vmem:[%s500 + $0xb4] sm:$0xf]
        %v598 = vld [vmem:[%s500 + $0xb8] sm:$0xf]
        %v599 = vld [vmem:[%s500 + $0xbc] sm:$0xf]
        %v600 = vld [vmem:[%s500 + $0xc0] sm:$0xf]
        %v601 = vld [vmem:[%s500 + $0xc4] sm:$0xf]
        %v602 = vld [vmem:[%s500 + $0xc8] sm:$0xf]
        %v603 = vld [vmem:[%s500 + $0xcc] sm:$0xf]
        %v604 = vld [vmem:[%s500 + $0xd0] sm:$0xf]
        %v605 = vld [vmem:[%s500 + $0xd4] sm:$0xf]
        %v606 = vld [vmem:[%s500 + $0xd8] sm:$0xf]
        %v607 = vld [vmem:[%s500 + $0xdc] sm:$0xf]
        %v608 = vld [vmem:[%s500 + $0xe0] sm:$0xf]
        %v609 = vld [vmem:[%s500 + $0xe4] sm:$0xf]
        %v610 = vld [vmem:[%s500 + $0xe8] sm:$0xf]
        %v611 = vld [vmem:[%s500 + $0xec] sm:$0xf]
        %v612 = vld [vmem:[%s500 + $0xf0] sm:$0xf]
        %v613 = vld [vmem:[%s500 + $0xf4] sm:$0xf]
        %v614 = vld [vmem:[%s500 + $0xf8] sm:$0xf]
        %v615 = vld [vmem:[%s500 + $0xfc] sm:$0xf]
        %v616 = vld [vmem:[%s421] sm:$0xff]
        %v617 = vld [vmem:[%s421 + $0x8] sm:$0xff]
        %v618 = vld [vmem:[%s421 + $0x10] sm:$0xff]
        %v619 = vld [vmem:[%s421 + $0x18] sm:$0xff]
        %v620 = vld [vmem:[%s429] sm:$0xf]
        %v621 = vld [vmem:[%s429 + $0x4] sm:$0xf]
        %v622 = vld [vmem:[%s429 + $0x8] sm:$0xf]
        %v623 = vld [vmem:[%s429 + $0xc] sm:$0xf]
        %v624 = vld [vmem:[%s429 + $0x10] sm:$0xf]
        %v625 = vld [vmem:[%s429 + $0x14] sm:$0xf]
        %v626 = vld [vmem:[%s429 + $0x18] sm:$0xf]
        %v627 = vld [vmem:[%s429 + $0x1c] sm:$0xf]
        %v628 = vld [vmem:[%s429 + $0x20] sm:$0xf]
        %v629 = vld [vmem:[%s429 + $0x24] sm:$0xf]
        %v630 = vld [vmem:[%s429 + $0x28] sm:$0xf]
        %v631 = vld [vmem:[%s429 + $0x2c] sm:$0xf]
        %v632 = vld [vmem:[%s429 + $0x30] sm:$0xf]
        %v633 = vld [vmem:[%s429 + $0x34] sm:$0xf]
        %v634 = vld [vmem:[%s429 + $0x38] sm:$0xf]
        %v635 = vld [vmem:[%s429 + $0x3c] sm:$0xf]
        %v636 = vld [vmem:[%s429 + $0x40] sm:$0xf]
        %v637 = vld [vmem:[%s429 + $0x44] sm:$0xf]
        %v638 = vld [vmem:[%s429 + $0x48] sm:$0xf]
        %v639 = vld [vmem:[%s429 + $0x4c] sm:$0xf]
        %v640 = vld [vmem:[%s429 + $0x50] sm:$0xf]
        %v641 = vld [vmem:[%s429 + $0x54] sm:$0xf]
        %v642 = vld [vmem:[%s429 + $0x58] sm:$0xf]
        %v643 = vld [vmem:[%s429 + $0x5c] sm:$0xf]
        %v644 = vld [vmem:[%s429 + $0x60] sm:$0xf]
        %v645 = vld [vmem:[%s429 + $0x64] sm:$0xf]
        %v646 = vld [vmem:[%s429 + $0x68] sm:$0xf]
        %v647 = vld [vmem:[%s429 + $0x6c] sm:$0xf]
        %v648 = vld [vmem:[%s429 + $0x70] sm:$0xf]
        %v649 = vld [vmem:[%s429 + $0x74] sm:$0xf]
        %v650 = vld [vmem:[%s429 + $0x78] sm:$0xf]
        %v651 = vld [vmem:[%s429 + $0x7c] sm:$0xf]
        %v652 = vld [vmem:[%s429 + $0x80] sm:$0xf]
        %v653 = vld [vmem:[%s429 + $0x84] sm:$0xf]
        %v654 = vld [vmem:[%s429 + $0x88] sm:$0xf]
        %v655 = vld [vmem:[%s429 + $0x8c] sm:$0xf]
        %v656 = vld [vmem:[%s429 + $0x90] sm:$0xf]
        %v657 = vld [vmem:[%s429 + $0x94] sm:$0xf]
        %v658 = vld [vmem:[%s429 + $0x98] sm:$0xf]
        %v659 = vld [vmem:[%s429 + $0x9c] sm:$0xf]
        %v660 = vld [vmem:[%s429 + $0xa0] sm:$0xf]
        %v661 = vld [vmem:[%s429 + $0xa4] sm:$0xf]
        %v662 = vld [vmem:[%s429 + $0xa8] sm:$0xf]
        %v663 = vld [vmem:[%s429 + $0xac] sm:$0xf]
        %v664 = vld [vmem:[%s429 + $0xb0] sm:$0xf]
        %v665 = vld [vmem:[%s429 + $0xb4] sm:$0xf]
        %v666 = vld [vmem:[%s429 + $0xb8] sm:$0xf]
        %v667 = vld [vmem:[%s429 + $0xbc] sm:$0xf]
        %v668 = vld [vmem:[%s429 + $0xc0] sm:$0xf]
        %v669 = vld [vmem:[%s429 + $0xc4] sm:$0xf]
        %v670 = vld [vmem:[%s429 + $0xc8] sm:$0xf]
        %v671 = vld [vmem:[%s429 + $0xcc] sm:$0xf]
        %v672 = vld [vmem:[%s429 + $0xd0] sm:$0xf]
        %v673 = vld [vmem:[%s429 + $0xd4] sm:$0xf]
        %v674 = vld [vmem:[%s429 + $0xd8] sm:$0xf]
        %v675 = vld [vmem:[%s429 + $0xdc] sm:$0xf]
        %v676 = vld [vmem:[%s429 + $0xe0] sm:$0xf]
        %v677 = vld [vmem:[%s429 + $0xe4] sm:$0xf]
        %v678 = vld [vmem:[%s429 + $0xe8] sm:$0xf]
        %v679 = vld [vmem:[%s429 + $0xec] sm:$0xf]
        %v680 = vld [vmem:[%s429 + $0xf0] sm:$0xf]
        %v681 = vld [vmem:[%s429 + $0xf4] sm:$0xf]
        %v682 = vld [vmem:[%s429 + $0xf8] sm:$0xf]
        %v683 = vld [vmem:[%s429 + $0xfc] sm:$0xf]
        %v688 = vunpack.c.l.b16 %v616
        %v689 = vunpack.c.h.b16 %v616
        %v690 = vunpack.c.l.b16 %v617
        %v691 = vunpack.c.h.b16 %v617
        %v692 = vunpack.c.l.b16 %v618
        %v693 = vunpack.c.h.b16 %v618
        %v694 = vunpack.c.l.b16 %v619
        %v695 = vunpack.c.h.b16 %v619
        %v696 = vpack.c.b16 %v692, %v688
        %v697 = vpack.c.b16 %v693, %v689
        %v698 = vpack.c.b16 %v694, %v690
        %v699 = vpack.c.b16 %v695, %v691
        %v768 = vunpack.c.l.b16 %v620
        %v769 = vunpack.c.l.b16 %v621
        %v770 = vunpack.c.l.b16 %v622
        %v771 = vunpack.c.l.b16 %v623
        %v772 = vunpack.c.l.b16 %v624
        %v773 = vunpack.c.l.b16 %v625
        %v774 = vunpack.c.l.b16 %v626
        %v775 = vunpack.c.l.b16 %v627
        %v776 = vunpack.c.l.b16 %v628
        %v777 = vunpack.c.l.b16 %v629
        %v778 = vunpack.c.l.b16 %v630
        %v779 = vunpack.c.l.b16 %v631
        %v780 = vunpack.c.l.b16 %v632
        %v781 = vunpack.c.l.b16 %v633
        %v782 = vunpack.c.l.b16 %v634
        %v783 = vunpack.c.l.b16 %v635
        %v784 = vunpack.c.l.b16 %v636
        %v785 = vunpack.c.l.b16 %v637
        %v786 = vunpack.c.l.b16 %v638
        %v787 = vunpack.c.l.b16 %v639
        %v788 = vunpack.c.l.b16 %v640
        %v789 = vunpack.c.l.b16 %v641
        %v790 = vunpack.c.l.b16 %v642
        %v791 = vunpack.c.l.b16 %v643
        %v792 = vunpack.c.l.b16 %v644
        %v793 = vunpack.c.l.b16 %v645
        %v794 = vunpack.c.l.b16 %v646
        %v795 = vunpack.c.l.b16 %v647
        %v796 = vunpack.c.l.b16 %v648
        %v797 = vunpack.c.l.b16 %v649
        %v798 = vunpack.c.l.b16 %v650
        %v799 = vunpack.c.l.b16 %v651
        %v800 = vunpack.c.l.b16 %v652
        %v801 = vunpack.c.l.b16 %v653
        %v802 = vunpack.c.l.b16 %v654
        %v803 = vunpack.c.l.b16 %v655
        %v804 = vunpack.c.l.b16 %v656
        %v805 = vunpack.c.l.b16 %v657
        %v806 = vunpack.c.l.b16 %v658
        %v807 = vunpack.c.l.b16 %v659
        %v808 = vunpack.c.l.b16 %v660
        %v809 = vunpack.c.l.b16 %v661
        %v810 = vunpack.c.l.b16 %v662
        %v811 = vunpack.c.l.b16 %v663
        %v812 = vunpack.c.l.b16 %v664
        %v813 = vunpack.c.l.b16 %v665
        %v814 = vunpack.c.l.b16 %v666
        %v815 = vunpack.c.l.b16 %v667
        %v816 = vunpack.c.l.b16 %v668
        %v817 = vunpack.c.l.b16 %v669
        %v818 = vunpack.c.l.b16 %v670
        %v819 = vunpack.c.l.b16 %v671
        %v820 = vunpack.c.l.b16 %v672
        %v821 = vunpack.c.l.b16 %v673
        %v822 = vunpack.c.l.b16 %v674
        %v823 = vunpack.c.l.b16 %v675
        %v824 = vunpack.c.l.b16 %v676
        %v825 = vunpack.c.l.b16 %v677
        %v826 = vunpack.c.l.b16 %v678
        %v827 = vunpack.c.l.b16 %v679
        %v828 = vunpack.c.l.b16 %v680
        %v829 = vunpack.c.l.b16 %v681
        %v830 = vunpack.c.l.b16 %v682
        %v831 = vunpack.c.l.b16 %v683
        %v832 = vpack.c.b16 %v769, %v768
        %v833 = vpack.c.b16 %v771, %v770
        %v834 = vpack.c.b16 %v773, %v772
        %v835 = vpack.c.b16 %v775, %v774
        %v836 = vpack.c.b16 %v777, %v776
        %v837 = vpack.c.b16 %v779, %v778
        %v838 = vpack.c.b16 %v781, %v780
        %v839 = vpack.c.b16 %v783, %v782
        %v840 = vpack.c.b16 %v785, %v784
        %v841 = vpack.c.b16 %v787, %v786
        %v842 = vpack.c.b16 %v789, %v788
        %v843 = vpack.c.b16 %v791, %v790
        %v844 = vpack.c.b16 %v793, %v792
        %v845 = vpack.c.b16 %v795, %v794
        %v846 = vpack.c.b16 %v797, %v796
        %v847 = vpack.c.b16 %v799, %v798
        %v848 = vpack.c.b16 %v801, %v800
        %v849 = vpack.c.b16 %v803, %v802
        %v850 = vpack.c.b16 %v805, %v804
        %v851 = vpack.c.b16 %v807, %v806
        %v852 = vpack.c.b16 %v809, %v808
        %v853 = vpack.c.b16 %v811, %v810
        %v854 = vpack.c.b16 %v813, %v812
        %v855 = vpack.c.b16 %v815, %v814
        %v856 = vpack.c.b16 %v817, %v816
        %v857 = vpack.c.b16 %v819, %v818
        %v858 = vpack.c.b16 %v821, %v820
        %v859 = vpack.c.b16 %v823, %v822
        %v860 = vpack.c.b16 %v825, %v824
        %v861 = vpack.c.b16 %v827, %v826
        %v862 = vpack.c.b16 %v829, %v828
        %v863 = vpack.c.b16 %v831, %v830
        %896 = vmatpush.bf16.msra.mxu0 %v839
        %897 = vmatpush.bf16.msra.mxu0 %v838
        %898 = vmatpush.bf16.msra.mxu0 %v837
        %899 = vmatpush.bf16.msra.mxu0 %v836
        %900 = vmatpush.bf16.msra.mxu0 %v835
        %901 = vmatpush.bf16.msra.mxu0 %v834
        %902 = vmatpush.bf16.msra.mxu0 %v833
        %903 = vmatpush.bf16.msra.mxu0 %v832
        %904 = vmatmul.bf16.gmra.mxu0 %v696
        %v905 = vpop.f32.mrf.mxu0
        %v906 = vadd.f32 0.0, %v905
        %v907 = vpop.f32.mrf.mxu0
        %v908 = vadd.f32 0.0, %v907
        %909 = vdwg.mxu0
        %910 = vmatpush.bf16.msra.mxu0 %v847
        %911 = vmatpush.bf16.msra.mxu0 %v846
        %912 = vmatpush.bf16.msra.mxu0 %v845
        %913 = vmatpush.bf16.msra.mxu0 %v844
        %914 = vmatpush.bf16.msra.mxu0 %v843
        %915 = vmatpush.bf16.msra.mxu0 %v842
        %916 = vmatpush.bf16.msra.mxu0 %v841
        %917 = vmatpush.bf16.msra.mxu0 %v840
        %918 = vmatmul.bf16.gmra.mxu0 %v697
        %v919 = vpop.f32.mrf.mxu0
        %v920 = vadd.f32 %v906, %v919
        %v921 = vpop.f32.mrf.mxu0
        %v922 = vadd.f32 %v908, %v921
        %923 = vdwg.mxu0
        %924 = vmatpush.bf16.msra.mxu0 %v855
        %925 = vmatpush.bf16.msra.mxu0 %v854
        %926 = vmatpush.bf16.msra.mxu0 %v853
        %927 = vmatpush.bf16.msra.mxu0 %v852
        %928 = vmatpush.bf16.msra.mxu0 %v851
        %929 = vmatpush.bf16.msra.mxu0 %v850
        %930 = vmatpush.bf16.msra.mxu0 %v849
        %931 = vmatpush.bf16.msra.mxu0 %v848
        %932 = vmatmul.bf16.gmra.mxu0 %v698
        %v933 = vpop.f32.mrf.mxu0
        %v934 = vadd.f32 %v920, %v933
        %v935 = vpop.f32.mrf.mxu0
        %v936 = vadd.f32 %v922, %v935
        %937 = vdwg.mxu0
        %938 = vmatpush.bf16.msra.mxu0 %v863
        %939 = vmatpush.bf16.msra.mxu0 %v862
        %940 = vmatpush.bf16.msra.mxu0 %v861
        %941 = vmatpush.bf16.msra.mxu0 %v860
        %942 = vmatpush.bf16.msra.mxu0 %v859
        %943 = vmatpush.bf16.msra.mxu0 %v858
        %944 = vmatpush.bf16.msra.mxu0 %v857
        %945 = vmatpush.bf16.msra.mxu0 %v856
        %946 = vmatmul.bf16.gmra.mxu0 %v699
        %v947 = vpop.f32.mrf.mxu0
        %v948 = vadd.f32 %v934, %v947
        %v949 = vpop.f32.mrf.mxu0
        %v950 = vadd.f32 %v936, %v949
        %951 = vdwg.mxu0
        %v956 = vunpack.c.l.b16 %v548
        %v957 = vunpack.c.h.b16 %v548
        %v958 = vunpack.c.l.b16 %v549
        %v959 = vunpack.c.h.b16 %v549
        %v960 = vunpack.c.l.b16 %v550
        %v961 = vunpack.c.h.b16 %v550
        %v962 = vunpack.c.l.b16 %v551
        %v963 = vunpack.c.h.b16 %v551
        %v964 = vpack.c.b16 %v960, %v956
        %v965 = vpack.c.b16 %v961, %v957
        %v966 = vpack.c.b16 %v962, %v958
        %v967 = vpack.c.b16 %v963, %v959
        %v1036 = vunpack.c.l.b16 %v552
        %v1037 = vunpack.c.l.b16 %v553
        %v1038 = vunpack.c.l.b16 %v554
        %v1039 = vunpack.c.l.b16 %v555
        %v1040 = vunpack.c.l.b16 %v556
        %v1041 = vunpack.c.l.b16 %v557
        %v1042 = vunpack.c.l.b16 %v558
        %v1043 = vunpack.c.l.b16 %v559
        %v1044 = vunpack.c.l.b16 %v560
        %v1045 = vunpack.c.l.b16 %v561
        %v1046 = vunpack.c.l.b16 %v562
        %v1047 = vunpack.c.l.b16 %v563
        %v1048 = vunpack.c.l.b16 %v564
        %v1049 = vunpack.c.l.b16 %v565
        %v1050 = vunpack.c.l.b16 %v566
        %v1051 = vunpack.c.l.b16 %v567
        %v1052 = vunpack.c.l.b16 %v568
        %v1053 = vunpack.c.l.b16 %v569
        %v1054 = vunpack.c.l.b16 %v570
        %v1055 = vunpack.c.l.b16 %v571
        %v1056 = vunpack.c.l.b16 %v572
        %v1057 = vunpack.c.l.b16 %v573
        %v1058 = vunpack.c.l.b16 %v574
        %v1059 = vunpack.c.l.b16 %v575
        %v1060 = vunpack.c.l.b16 %v576
        %v1061 = vunpack.c.l.b16 %v577
        %v1062 = vunpack.c.l.b16 %v578
        %v1063 = vunpack.c.l.b16 %v579
        %v1064 = vunpack.c.l.b16 %v580
        %v1065 = vunpack.c.l.b16 %v581
        %v1066 = vunpack.c.l.b16 %v582
        %v1067 = vunpack.c.l.b16 %v583
        %v1068 = vunpack.c.l.b16 %v584
        %v1069 = vunpack.c.l.b16 %v585
        %v1070 = vunpack.c.l.b16 %v586
        %v1071 = vunpack.c.l.b16 %v587
        %v1072 = vunpack.c.l.b16 %v588
        %v1073 = vunpack.c.l.b16 %v589
        %v1074 = vunpack.c.l.b16 %v590
        %v1075 = vunpack.c.l.b16 %v591
        %v1076 = vunpack.c.l.b16 %v592
        %v1077 = vunpack.c.l.b16 %v593
        %v1078 = vunpack.c.l.b16 %v594
        %v1079 = vunpack.c.l.b16 %v595
        %v1080 = vunpack.c.l.b16 %v596
        %v1081 = vunpack.c.l.b16 %v597
        %v1082 = vunpack.c.l.b16 %v598
        %v1083 = vunpack.c.l.b16 %v599
        %v1084 = vunpack.c.l.b16 %v600
        %v1085 = vunpack.c.l.b16 %v601
        %v1086 = vunpack.c.l.b16 %v602
        %v1087 = vunpack.c.l.b16 %v603
        %v1088 = vunpack.c.l.b16 %v604
        %v1089 = vunpack.c.l.b16 %v605
        %v1090 = vunpack.c.l.b16 %v606
        %v1091 = vunpack.c.l.b16 %v607
        %v1092 = vunpack.c.l.b16 %v608
        %v1093 = vunpack.c.l.b16 %v609
        %v1094 = vunpack.c.l.b16 %v610
        %v1095 = vunpack.c.l.b16 %v611
        %v1096 = vunpack.c.l.b16 %v612
        %v1097 = vunpack.c.l.b16 %v613
        %v1098 = vunpack.c.l.b16 %v614
        %v1099 = vunpack.c.l.b16 %v615
        %v1100 = vpack.c.b16 %v1037, %v1036
        %v1101 = vpack.c.b16 %v1039, %v1038
        %v1102 = vpack.c.b16 %v1041, %v1040
        %v1103 = vpack.c.b16 %v1043, %v1042
        %v1104 = vpack.c.b16 %v1045, %v1044
        %v1105 = vpack.c.b16 %v1047, %v1046
        %v1106 = vpack.c.b16 %v1049, %v1048
        %v1107 = vpack.c.b16 %v1051, %v1050
        %v1108 = vpack.c.b16 %v1053, %v1052
        %v1109 = vpack.c.b16 %v1055, %v1054
        %v1110 = vpack.c.b16 %v1057, %v1056
        %v1111 = vpack.c.b16 %v1059, %v1058
        %v1112 = vpack.c.b16 %v1061, %v1060
        %v1113 = vpack.c.b16 %v1063, %v1062
        %v1114 = vpack.c.b16 %v1065, %v1064
        %v1115 = vpack.c.b16 %v1067, %v1066
        %v1116 = vpack.c.b16 %v1069, %v1068
        %v1117 = vpack.c.b16 %v1071, %v1070
        %v1118 = vpack.c.b16 %v1073, %v1072
        %v1119 = vpack.c.b16 %v1075, %v1074
        %v1120 = vpack.c.b16 %v1077, %v1076
        %v1121 = vpack.c.b16 %v1079, %v1078
        %v1122 = vpack.c.b16 %v1081, %v1080
        %v1123 = vpack.c.b16 %v1083, %v1082
        %v1124 = vpack.c.b16 %v1085, %v1084
        %v1125 = vpack.c.b16 %v1087, %v1086
        %v1126 = vpack.c.b16 %v1089, %v1088
        %v1127 = vpack.c.b16 %v1091, %v1090
        %v1128 = vpack.c.b16 %v1093, %v1092
        %v1129 = vpack.c.b16 %v1095, %v1094
        %v1130 = vpack.c.b16 %v1097, %v1096
        %v1131 = vpack.c.b16 %v1099, %v1098
        %1164 = vmatpush.bf16.msra.mxu0 %v1107
        %1165 = vmatpush.bf16.msra.mxu0 %v1106
        %1166 = vmatpush.bf16.msra.mxu0 %v1105
        %1167 = vmatpush.bf16.msra.mxu0 %v1104
        %1168 = vmatpush.bf16.msra.mxu0 %v1103
        %1169 = vmatpush.bf16.msra.mxu0 %v1102
        %1170 = vmatpush.bf16.msra.mxu0 %v1101
        %1171 = vmatpush.bf16.msra.mxu0 %v1100
        %1172 = vmatmul.bf16.gmra.mxu0 %v964
        %v1173 = vpop.f32.mrf.mxu0
        %v1174 = vadd.f32 %v948, %v1173
        %v1175 = vpop.f32.mrf.mxu0
        %v1176 = vadd.f32 %v950, %v1175
        %1177 = vdwg.mxu0
        %1178 = vmatpush.bf16.msra.mxu0 %v1115
        %1179 = vmatpush.bf16.msra.mxu0 %v1114
        %1180 = vmatpush.bf16.msra.mxu0 %v1113
        %1181 = vmatpush.bf16.msra.mxu0 %v1112
        %1182 = vmatpush.bf16.msra.mxu0 %v1111
        %1183 = vmatpush.bf16.msra.mxu0 %v1110
        %1184 = vmatpush.bf16.msra.mxu0 %v1109
        %1185 = vmatpush.bf16.msra.mxu0 %v1108
        %1186 = vmatmul.bf16.gmra.mxu0 %v965
        %v1187 = vpop.f32.mrf.mxu0
        %v1188 = vadd.f32 %v1174, %v1187
        %v1189 = vpop.f32.mrf.mxu0
        %v1190 = vadd.f32 %v1176, %v1189
        %1191 = vdwg.mxu0
        %1192 = vmatpush.bf16.msra.mxu0 %v1123
        %1193 = vmatpush.bf16.msra.mxu0 %v1122
        %1194 = vmatpush.bf16.msra.mxu0 %v1121
        %1195 = vmatpush.bf16.msra.mxu0 %v1120
        %1196 = vmatpush.bf16.msra.mxu0 %v1119
        %1197 = vmatpush.bf16.msra.mxu0 %v1118
        %1198 = vmatpush.bf16.msra.mxu0 %v1117
        %1199 = vmatpush.bf16.msra.mxu0 %v1116
        %1200 = vmatmul.bf16.gmra.mxu0 %v966
        %v1201 = vpop.f32.mrf.mxu0
        %v1202 = vadd.f32 %v1188, %v1201
        %v1203 = vpop.f32.mrf.mxu0
        %v1204 = vadd.f32 %v1190, %v1203
        %1205 = vdwg.mxu0
        %1206 = vmatpush.bf16.msra.mxu0 %v1131
        %1207 = vmatpush.bf16.msra.mxu0 %v1130
        %1208 = vmatpush.bf16.msra.mxu0 %v1129
        %1209 = vmatpush.bf16.msra.mxu0 %v1128
        %1210 = vmatpush.bf16.msra.mxu0 %v1127
        %1211 = vmatpush.bf16.msra.mxu0 %v1126
        %1212 = vmatpush.bf16.msra.mxu0 %v1125
        %1213 = vmatpush.bf16.msra.mxu0 %v1124
        %1214 = vmatmul.bf16.gmra.mxu0 %v967
        %v1215 = vpop.f32.mrf.mxu0
        %v1216 = vadd.f32 %v1202, %v1215
        %v1217 = vpop.f32.mrf.mxu0
        %v1218 = vadd.f32 %v1204, %v1217
        %1219 = vdwg.mxu0
        %v1220 = vadd.f32 %v546, %v1216
        %v1221 = vadd.f32 %v547, %v1218
        %1222 = vst [vmem:[#allocation2] sm:$0xff] %v1220
        %1223 = vst [vmem:[#allocation2 + $0x8] sm:$0xff] %v1221
        %p1224 = scmp.eq.s32.totalorder %s28, 1
        // Predicated region
        $region111: #{ensemble_forward.1} parent=89 // pred_check
          %p1225 = pneg %p1224
        $region112: #{ensemble_forward.1} parent=89 // pred_check_branch
          %1227 = sbr.rel (%p1225) target = $region114
        $region113: #{ensemble_forward.1} parent=89 // pred_region
          %v1228 = vld [vmem:[#allocation2] sm:$0xff]
          %v1229 = vld [vmem:[#allocation2 + $0x8] sm:$0xff]
          %v1230 = vld [vmem:[%s6] sm:$0x1]
          %v1232 = vperm.slane %v1230, 0
          %v1234 = vadd.f32 %v1228, %v1232
          %v1235 = vadd.f32 %v1229, %v1232
          %v1236 = vxor.u32 %v1234, 2147483648
          %v1237 = vxor.u32 %v1235, 2147483648
          %v1238 = vmul.f32 %v1236, 1.442695
          %v1239 = vpow.pop %v1238
          %v1240 = vmul.f32 %v1237, 1.442695
          %v1241 = vpow.pop %v1240
          %v1242 = vadd.f32 %v1239, 1.0
          %v1243 = vadd.f32 %v1241, 1.0
          %v1244 = vrcp.pop %v1242
          %v1245 = vmul.f32 %v1242, %v1244
          %v1246 = vsub.f32 1.0, %v1245
          %v1247 = vmul.f32 %v1244, %v1246
          %v1248 = vadd.f32 %v1244, %v1247
          %vm1249 = vweird.f32 %v1242
          %vm1250 = vweird.f32 %v1244
          %vm1251 = vmor %vm1249, %vm1250
          %v1252 = vsel %vm1251, %v1244, %v1248
          %v1253 = vand.u32 2147483647, %v1242
          %vm1254 = vcmp.eq.f32.partialorder %v1253, 8.507059e+37
          %v1255 = vand.u32 %v1242, 2147483648
          %v1256 = vor.u32 1.1754944e-38, %v1255
          %v1257 = vsel %vm1254, %v1256, %v1252
          %v1258 = vmul.f32 1.0, %v1257
          %v1259 = vrcp.pop %v1243
          %v1260 = vmul.f32 %v1243, %v1259
          %v1261 = vsub.f32 1.0, %v1260
          %v1262 = vmul.f32 %v1259, %v1261
          %v1263 = vadd.f32 %v1259, %v1262
          %vm1264 = vweird.f32 %v1243
          %vm1265 = vweird.f32 %v1259
          %vm1266 = vmor %vm1264, %vm1265
          %v1267 = vsel %vm1266, %v1259, %v1263
          %v1268 = vand.u32 2147483647, %v1243
          %vm1269 = vcmp.eq.f32.partialorder %v1268, 8.507059e+37
          %v1270 = vand.u32 %v1243, 2147483648
          %v1271 = vor.u32 1.1754944e-38, %v1270
          %v1272 = vsel %vm1269, %v1271, %v1267
          %v1273 = vmul.f32 1.0, %v1272
          %v1274 = vpack.c.bf16 %v1273, %v1258
          %v1275 = vld [vmem:[#allocation7] sm:$0xf]
          %v1276 = vld [vmem:[#allocation7 + $0x4] sm:$0xf]
          %v1277 = vld [vmem:[#allocation7 + $0x8] sm:$0xf]
          %v1278 = vld [vmem:[#allocation7 + $0xc] sm:$0xf]
          %v1279 = vld [vmem:[#allocation7 + $0x10] sm:$0xf]
          %v1280 = vld [vmem:[#allocation7 + $0x14] sm:$0xf]
          %v1281 = vld [vmem:[#allocation7 + $0x18] sm:$0xf]
          %v1282 = vld [vmem:[#allocation7 + $0x1c] sm:$0xf]
          %v1283 = vld [vmem:[#allocation7 + $0x20] sm:$0xf]
          %v1284 = vld [vmem:[#allocation7 + $0x24] sm:$0xf]
          %v1285 = vld [vmem:[#allocation7 + $0x28] sm:$0xf]
          %v1286 = vld [vmem:[#allocation7 + $0x2c] sm:$0xf]
          %v1287 = vld [vmem:[#allocation7 + $0x30] sm:$0xf]
          %v1288 = vld [vmem:[#allocation7 + $0x34] sm:$0xf]
          %v1289 = vld [vmem:[#allocation7 + $0x38] sm:$0xf]
          %v1290 = vld [vmem:[#allocation7 + $0x3c] sm:$0xf]
          %v1307 = vunpack.c.l.b16 %v1275
          %v1308 = vunpack.c.l.b16 %v1276
          %v1309 = vunpack.c.l.b16 %v1277
          %v1310 = vunpack.c.l.b16 %v1278
          %v1311 = vunpack.c.l.b16 %v1279
          %v1312 = vunpack.c.l.b16 %v1280
          %v1313 = vunpack.c.l.b16 %v1281
          %v1314 = vunpack.c.l.b16 %v1282
          %v1315 = vunpack.c.l.b16 %v1283
          %v1316 = vunpack.c.l.b16 %v1284
          %v1317 = vunpack.c.l.b16 %v1285
          %v1318 = vunpack.c.l.b16 %v1286
          %v1319 = vunpack.c.l.b16 %v1287
          %v1320 = vunpack.c.l.b16 %v1288
          %v1321 = vunpack.c.l.b16 %v1289
          %v1322 = vunpack.c.l.b16 %v1290
          %v1323 = vpack.c.b16 %v1308, %v1307
          %v1324 = vpack.c.b16 %v1310, %v1309
          %v1325 = vpack.c.b16 %v1312, %v1311
          %v1326 = vpack.c.b16 %v1314, %v1313
          %v1327 = vpack.c.b16 %v1316, %v1315
          %v1328 = vpack.c.b16 %v1318, %v1317
          %v1329 = vpack.c.b16 %v1320, %v1319
          %v1330 = vpack.c.b16 %v1322, %v1321
          %1339 = vmatpush.bf16.msra.mxu0 %v1330
          %1340 = vmatpush.bf16.msra.mxu0 %v1329
          %1341 = vmatpush.bf16.msra.mxu0 %v1328
          %1342 = vmatpush.bf16.msra.mxu0 %v1327
          %1343 = vmatpush.bf16.msra.mxu0 %v1326
          %1344 = vmatpush.bf16.msra.mxu0 %v1325
          %1345 = vmatpush.bf16.msra.mxu0 %v1324
          %1346 = vmatpush.bf16.msra.mxu0 %v1323
          %1347 = vmatmul.bf16.gmra.mxu0 %v1274
          %v1348 = vpop.f32.mrf.mxu0
          %v1349 = vadd.f32 0.0, %v1348
          %v1350 = vpop.f32.mrf.mxu0
          %v1351 = vadd.f32 0.0, %v1350
          %1352 = vdwg.mxu0
          %1353 = vst [vmem:[%s507] sm:$0xff] %v1349
          %1354 = vst [vmem:[%s507 + $0x8] sm:$0xff] %v1351
        $region114: #{ensemble_forward.1} parent=89 // pred_fallthru
          _
        %s1355 = smul.u32 2, %s27
        %p1356 = scmp.lt.s32.totalorder %s1355, 1
        %s1357 = scalar_select %p1356, %s1355, 1
        %s1358 = smul.addr %s1357, 8
        %s1359 = scalar_lea.vmem %s8, %s1358
        // Predicated region
        $region115: #{ensemble_forward.1} parent=89 // pred_check
          %p1360 = pneg %p250
        $region116: #{ensemble_forward.1} parent=89 // pred_check_branch
          %1362 = sbr.rel (%p1360) target = $region118
        $region117: #{ensemble_forward.1} parent=89 // pred_region
          %s1363 = smul.u32 2, %s27
        $region118: #{ensemble_forward.1} parent=89 // pred_fallthru
          _
        // Predicated region
        $region119: #{ensemble_forward.1} parent=89 // pred_check
          %p1364 = pneg %p250
        $region120: #{ensemble_forward.1} parent=89 // pred_check_branch
          %1366 = sbr.rel (%p1364) target = $region122
        $region121: #{ensemble_forward.1} parent=89 // pred_region
          %s1367 = smul.u32 2, %s27
          %p1368 = scmp.lt.s32.totalorder %s1367, 1
          %s1369 = scalar_select %p1368, %s1367, 1
          %s1370 = smul.addr %s1369, 8
          %s1371 = scalar_lea.vmem %s8, %s1370
        $region122: #{ensemble_forward.1} parent=89 // pred_fallthru
          _
      $region90: #{ensemble_forward.1} parent=5 // pred_fallthru
        _
      %p1372 = scmp.le.s32.totalorder 2, %s18
      // Predicated region
      $region123: #{ensemble_forward.1} parent=5 // pred_check
        %p1373 = pneg %p1372
      $region124: #{ensemble_forward.1} parent=5 // pred_check_branch
        %1375 = sbr.rel (%p1373) target = $region126
      $region125: #{ensemble_forward.1} parent=5 // pred_region
        %s1376 = ssub.s32 %s18, 2
      $region126: #{ensemble_forward.1} parent=5 // pred_fallthru
        _
    $region6: #{ensemble_forward.1} parent=1 // loop_footer
      %s22 = sadd.s32 1, %s18
    $region7: #{ensemble_forward.1} parent=1 // loop_footer_branch
      %17 = sbr.rel target = $region3
    $region8: #{ensemble_forward.1} parent=1 // loop_exit
      _
    %1377 = vsyncpa [#allocation6], 1
    %s1378 = scalar_lea.sflag [#allocation6], 1
    %1379 = vsyncpa %s1378, 1
    %1380 = vsyncpa [#allocation8], 1

// kernel: ensemble_forward.1
$region0: #{ensemble_forward.1}
  #allocation0 [shape = 'u32[]', space=smem, size = 0x4, offset = 0x4, fixed_abs, tag = 'smem constant byte address 0x4 - core index']
  #allocation1 [shape = 'u32[72,128]{1,0:T(1,128)}', space=vmem, size = 0x9000, scoped, tag = 'internal scratch']
  #allocation2 [shape = 'f32[16,128]{1,0:T(8,128)}', space=vmem, size = 0x2000, scoped, tag = 'scratch operand']
  %s0 = inlined_call_operand.vmem [shape: bf16[16,1024], index: 0, kind: input, shape index: {}]
  %s1 = inlined_call_operand.vmem [shape: bf16[16,1024], index: 1, kind: input, shape index: {}]
  %s2 = inlined_call_operand.vmem [shape: bf16[16,8], index: 2, kind: input, shape index: {}]
  %s3 = inlined_call_operand.vmem [shape: bf16[1024,128], index: 3, kind: input, shape index: {}]
  %s4 = inlined_call_operand.hbm [shape: bf16[1024,128], index: 4, kind: input, shape index: {}]
  %s5 = inlined_call_operand.vmem [shape: bf16[8,128], index: 5, kind: input, shape index: {}]
  %s6 = inlined_call_operand.vmem [shape: f32[1,128], index: 6, kind: input, shape index: {}]
  %s7 = inlined_call_operand.hbm [shape: bf16[128,128], index: 7, kind: input, shape index: {}]
  %s8 = inlined_call_operand.vmem [shape: f32[16,128], index: 8, kind: output, shape index: {}]
  %s9 = sld [smem:[#allocation0]]
  $region127: #{ensemble_forward.1} parent=0
    _
  %s11 = ssub.s32 1, %s9
  %s12 = scalar_select 0, %s11, %s9
  $region1: #{ensemble_forward.1} parent=0
    #allocation3 [shape = 'u8[32768]{0}', space=vmem, size = 0x8000, scoped, tag = 'input window, operand 0']
    #allocation4 [shape = 'u8[32768]{0}', space=vmem, size = 0x8000, scoped, tag = 'input window, operand 1']
    #allocation5 [shape = 'u8[262144]{0}', space=vmem, size = 0x40000, scoped, tag = 'input window, operand 4']
    #allocation6 [shape = 's32[2]{0}', space=sflag, size = 0x8, scoped, tag = 'scoped memory for ensemble_forward.1']
    #allocation7 [shape = 'u8[32768]{0}', space=vmem, size = 0x8000, scoped, tag = 'input window, operand 7, single buffered']
    #allocation8 [shape = 's32[1]{0}', space=sflag, size = 0x4, scoped, tag = 'scoped memory for ensemble_forward.1']
    %13 = vsyncpa [#allocation6], 0
    %s14 = scalar_lea.sflag [#allocation6], 1
    %15 = vsyncpa %s14, 0
    %16 = vsyncpa [#allocation8], 0
    loop: start=0, step=1, limit=4
    $region2: #{ensemble_forward.1} parent=1 // loop_pre_header
      _
    $region3: #{ensemble_forward.1} parent=1 // loop_header
      %s18 = sphi 0, %s22
      %p19 = scmp.ge.s32.totalorder %s18, 4
      %s25 = sphi 0, %s37
      %s26 = sphi 0, %s33
      %s27 = sphi 0, %s25
      %s28 = sphi 0, %s26
      %s29 = sphi 0, %s27
      %s30 = sphi 0, %s28
      %s42 = sphi 0, %s44
      %s45 = sphi 0, %s42
      %s46 = sphi 0, %s45
      %s62 = sphi 0, %s46
      %s70 = sphi 0, %s72
      %s73 = sphi 0, %s70
      %s74 = sphi 0, %s73
      %s90 = sphi 0, %s74
      %s96 = sphi 0, %s98
      %s99 = sphi 0, %s96
      %s100 = sphi 0, %s99
      %s116 = sphi 0, %s100
      %s122 = sphi 0, %s124
      %s125 = sphi 0, %s122
      %s126 = sphi 0, %s125
      %s142 = sphi 0, %s126
      %s148 = sphi 0, %s150
      %s151 = sphi 0, %s148
      %s152 = sphi 0, %s151
      %s168 = sphi 0, %s152
      %s172 = sphi 0, %s172
      %s174 = sphi 0, %s172
      %s175 = sphi 0, %s174
      %s189 = sphi 0, %s175
      %s193 = sphi 0, %s193
      %s195 = sphi 0, %s193
      %s196 = sphi 0, %s195
      %s210 = sphi 0, %s196
      %s214 = sphi 0, %s214
      %s216 = sphi 0, %s214
      %s217 = sphi 0, %s216
      %s231 = sphi 0, %s217
      %s237 = sphi 0, %s239
      %s240 = sphi 0, %s237
      %s241 = sphi 0, %s240
      %s257 = sphi 0, %s241
    $region4: #{ensemble_forward.1} parent=1 // loop_header_branch
      %21 = sbr.rel (%p19) target = $region8
    $region5: #{ensemble_forward.1} parent=1 // loop_body
      %s23 = ssub.s32 %s18, 1
      %s24 = ssub.s32 %s18, 2
      %s31 = sadd.s32 1, %s26
      %p32 = scmp.ge.s32.totalorder %s31, 2
      %s33 = scalar_select %p32, 0, %s31
      %s34 = sadd.s32 1, %s25
      %s35 = scalar_select %p32, %s34, %s25
      %p36 = scmp.ge.s32.totalorder %s35, 1
      %s37 = scalar_select %p36, 0, %s35
      %s38 = ssub.s32 %s25, %s37
      %s39 = ssub.s32 %s26, %s33
      %s40 = sor.u32 %s38, %s39
      %p41 = scmp.eq.s32.totalorder %s40, 0
      %s43 = sadd.s32 %s42, 1
      %s44 = scalar_select %p41, %s42, %s43
      %p47 = pneg %p41
      %p48 = scmp.eq.s32.totalorder %s18, 1
      %p49 = por %p47, %p48
      %p50 = scmp.ne.s32.totalorder %s42, %s45
      %p51 = scmp.eq.s32.totalorder %s18, 0
      %p52 = por %p50, %p51
      %p53 = scmp.ne.s32.totalorder %s42, %s45
      %p54 = scmp.eq.s32.totalorder %s23, 1
      %p55 = por %p53, %p54
      %p56 = scmp.ne.s32.totalorder %s45, %s46
      %p57 = scmp.eq.s32.totalorder %s23, 0
      %p58 = por %p56, %p57
      %p59 = scmp.ne.s32.totalorder %s45, %s46
      %p60 = scmp.eq.s32.totalorder %s24, 1
      %p61 = por %p59, %p60
      %p63 = scmp.ne.s32.totalorder %s46, %s62
      %p64 = scmp.eq.s32.totalorder %s24, 0
      %p65 = por %p63, %p64
      %s66 = ssub.s32 %s25, %s37
      %s67 = ssub.s32 %s26, %s33
      %s68 = sor.u32 %s66, %s67
      %p69 = scmp.eq.s32.totalorder %s68, 0
      %s71 = sadd.s32 %s70, 1
      %s72 = scalar_select %p69, %s70, %s71
      %p75 = pneg %p69
      %p76 = scmp.eq.s32.totalorder %s18, 1
      %p77 = por %p75, %p76
      %p78 = scmp.ne.s32.totalorder %s70, %s73
      %p79 = scmp.eq.s32.totalorder %s18, 0
      %p80 = por %p78, %p79
      %p81 = scmp.ne.s32.totalorder %s70, %s73
      %p82 = scmp.eq.s32.totalorder %s23, 1
      %p83 = por %p81, %p82
      %p84 = scmp.ne.s32.totalorder %s73, %s74
      %p85 = scmp.eq.s32.totalorder %s23, 0
      %p86 = por %p84, %p85
      %p87 = scmp.ne.s32.totalorder %s73, %s74
      %p88 = scmp.eq.s32.totalorder %s24, 1
      %p89 = por %p87, %p88
      %p91 = scmp.ne.s32.totalorder %s74, %s90
      %p92 = scmp.eq.s32.totalorder %s24, 0
      %p93 = por %p91, %p92
      %s94 = ssub.s32 %s25, %s37
      %p95 = scmp.eq.s32.totalorder %s94, 0
      %s97 = sadd.s32 %s96, 1
      %s98 = scalar_select %p95, %s96, %s97
      %p101 = pneg %p95
      %p102 = scmp.eq.s32.totalorder %s18, 1
      %p103 = por %p101, %p102
      %p104 = scmp.ne.s32.totalorder %s96, %s99
      %p105 = scmp.eq.s32.totalorder %s18, 0
      %p106 = por %p104, %p105
      %p107 = scmp.ne.s32.totalorder %s96, %s99
      %p108 = scmp.eq.s32.totalorder %s23, 1
      %p109 = por %p107, %p108
      %p110 = scmp.ne.s32.totalorder %s99, %s100
      %p111 = scmp.eq.s32.totalorder %s23, 0
      %p112 = por %p110, %p111
      %p113 = scmp.ne.s32.totalorder %s99, %s100
      %p114 = scmp.eq.s32.totalorder %s24, 1
      %p115 = por %p113, %p114
      %p117 = scmp.ne.s32.totalorder %s100, %s116
      %p118 = scmp.eq.s32.totalorder %s24, 0
      %p119 = por %p117, %p118
      %s120 = ssub.s32 %s26, %s33
      %p121 = scmp.eq.s32.totalorder %s120, 0
      %s123 = sadd.s32 %s122, 1
      %s124 = scalar_select %p121, %s122, %s123
      %p127 = pneg %p121
      %p128 = scmp.eq.s32.totalorder %s18, 1
      %p129 = por %p127, %p128
      %p130 = scmp.ne.s32.totalorder %s122, %s125
      %p131 = scmp.eq.s32.totalorder %s18, 0
      %p132 = por %p130, %p131
      %p133 = scmp.ne.s32.totalorder %s122, %s125
      %p134 = scmp.eq.s32.totalorder %s23, 1
      %p135 = por %p133, %p134
      %p136 = scmp.ne.s32.totalorder %s125, %s126
      %p137 = scmp.eq.s32.totalorder %s23, 0
      %p138 = por %p136, %p137
      %p139 = scmp.ne.s32.totalorder %s125, %s126
      %p140 = scmp.eq.s32.totalorder %s24, 1
      %p141 = por %p139, %p140
      %p143 = scmp.ne.s32.totalorder %s126, %s142
      %p144 = scmp.eq.s32.totalorder %s24, 0
      %p145 = por %p143, %p144
      %s146 = ssub.s32 %s26, %s33
      %p147 = scmp.eq.s32.totalorder %s146, 0
      %s149 = sadd.s32 %s148, 1
      %s150 = scalar_select %p147, %s148, %s149
      %p153 = pneg %p147
      %p154 = scmp.eq.s32.totalorder %s18, 1
      %p155 = por %p153, %p154
      %p156 = scmp.ne.s32.totalorder %s148, %s151
      %p157 = scmp.eq.s32.totalorder %s18, 0
      %p158 = por %p156, %p157
      %p159 = scmp.ne.s32.totalorder %s148, %s151
      %p160 = scmp.eq.s32.totalorder %s23, 1
      %p161 = por %p159, %p160
      %p162 = scmp.ne.s32.totalorder %s151, %s152
      %p163 = scmp.eq.s32.totalorder %s23, 0
      %p164 = por %p162, %p163
      %p165 = scmp.ne.s32.totalorder %s151, %s152
      %p166 = scmp.eq.s32.totalorder %s24, 1
      %p167 = por %p165, %p166
      %p169 = scmp.ne.s32.totalorder %s152, %s168
      %p170 = scmp.eq.s32.totalorder %s24, 0
      %p171 = por %p169, %p170
      %s173 = sadd.s32 %s172, 1
      %p176 = scmp.eq.s32.totalorder %s18, 1
      %p177 = scmp.ne.s32.totalorder %s172, %s174
      %p178 = scmp.eq.s32.totalorder %s18, 0
      %p179 = por %p177, %p178
      %p180 = scmp.ne.s32.totalorder %s172, %s174
      %p181 = scmp.eq.s32.totalorder %s23, 1
      %p182 = por %p180, %p181
      %p183 = scmp.ne.s32.totalorder %s174, %s175
      %p184 = scmp.eq.s32.totalorder %s23, 0
      %p185 = por %p183, %p184
      %p186 = scmp.ne.s32.totalorder %s174, %s175
      %p187 = scmp.eq.s32.totalorder %s24, 1
      %p188 = por %p186, %p187
      %p190 = scmp.ne.s32.totalorder %s175, %s189
      %p191 = scmp.eq.s32.totalorder %s24, 0
      %p192 = por %p190, %p191
      %s194 = sadd.s32 %s193, 1
      %p197 = scmp.eq.s32.totalorder %s18, 1
      %p198 = scmp.ne.s32.totalorder %s193, %s195
      %p199 = scmp.eq.s32.totalorder %s18, 0
      %p200 = por %p198, %p199
      %p201 = scmp.ne.s32.totalorder %s193, %s195
      %p202 = scmp.eq.s32.totalorder %s23, 1
      %p203 = por %p201, %p202
      %p204 = scmp.ne.s32.totalorder %s195, %s196
      %p205 = scmp.eq.s32.totalorder %s23, 0
      %p206 = por %p204, %p205
      %p207 = scmp.ne.s32.totalorder %s195, %s196
      %p208 = scmp.eq.s32.totalorder %s24, 1
      %p209 = por %p207, %p208
      %p211 = scmp.ne.s32.totalorder %s196, %s210
      %p212 = scmp.eq.s32.totalorder %s24, 0
      %p213 = por %p211, %p212
      %s215 = sadd.s32 %s214, 1
      %p218 = scmp.eq.s32.totalorder %s18, 1
      %p219 = scmp.ne.s32.totalorder %s214, %s216
      %p220 = scmp.eq.s32.totalorder %s18, 0
      %p221 = por %p219, %p220
      %p222 = scmp.ne.s32.totalorder %s214, %s216
      %p223 = scmp.eq.s32.totalorder %s23, 1
      %p224 = por %p222, %p223
      %p225 = scmp.ne.s32.totalorder %s216, %s217
      %p226 = scmp.eq.s32.totalorder %s23, 0
      %p227 = por %p225, %p226
      %p228 = scmp.ne.s32.totalorder %s216, %s217
      %p229 = scmp.eq.s32.totalorder %s24, 1
      %p230 = por %p228, %p229
      %p232 = scmp.ne.s32.totalorder %s217, %s231
      %p233 = scmp.eq.s32.totalorder %s24, 0
      %p234 = por %p232, %p233
      %s235 = ssub.s32 %s25, %s37
      %p236 = scmp.eq.s32.totalorder %s235, 0
      %s238 = sadd.s32 %s237, 1
      %s239 = scalar_select %p236, %s237, %s238
      %p242 = pneg %p236
      %p243 = scmp.eq.s32.totalorder %s18, 1
      %p244 = por %p242, %p243
      %p245 = scmp.ne.s32.totalorder %s237, %s240
      %p246 = scmp.eq.s32.totalorder %s18, 0
      %p247 = por %p245, %p246
      %p248 = scmp.ne.s32.totalorder %s237, %s240
      %p249 = scmp.eq.s32.totalorder %s23, 1
      %p250 = por %p248, %p249
      %p251 = scmp.ne.s32.totalorder %s240, %s241
      %p252 = scmp.eq.s32.totalorder %s23, 0
      %p253 = por %p251, %p252
      %p254 = scmp.ne.s32.totalorder %s240, %s241
      %p255 = scmp.eq.s32.totalorder %s24, 1
      %p256 = por %p254, %p255
      %p258 = scmp.ne.s32.totalorder %s241, %s257
      %p259 = scmp.eq.s32.totalorder %s24, 0
      %p260 = por %p258, %p259
      %p261 = scmp.le.s32.totalorder 1, %s18
      %p262 = scmp.lt.s32.totalorder %s18, 3
      %p263 = pnand %p261, %p262
      %p264 = pneg %p263
      // Predicated region
      $region9: #{ensemble_forward.1} parent=5 // pred_check
        _
      $region10: #{ensemble_forward.1} parent=5 // pred_check_branch
        %266 = sbr.rel (%p263) target = $region12
      $region11: #{ensemble_forward.1} parent=5 // pred_region
        %s267 = ssub.s32 %s18, 1
        // Predicated region
        $region13: #{ensemble_forward.1} parent=11 // pred_check
          %p268 = pneg %p112
        $region14: #{ensemble_forward.1} parent=11 // pred_check_branch
          %270 = sbr.rel (%p268) target = $region16
        $region15: #{ensemble_forward.1} parent=11 // pred_region
          %s271 = smul.u32 2, %s27
          %p272 = scmp.lt.s32.totalorder %s271, 1
          %s273 = scalar_select %p272, %s271, 1
          %s274 = smul.addr %s273, 4
          %s275 = scalar_lea.vmem %s2, %s274
          %s276 = smul.u32 2, %s27
        $region16: #{ensemble_forward.1} parent=11 // pred_fallthru
          _
        // Predicated region
        $region17: #{ensemble_forward.1} parent=11 // pred_check
          %p277 = pneg %p185
        $region18: #{ensemble_forward.1} parent=11 // pred_check_branch
          %279 = sbr.rel (%p277) target = $region20
        $region19: #{ensemble_forward.1} parent=11 // pred_region
          _
        $region20: #{ensemble_forward.1} parent=11 // pred_fallthru
          _
        // Predicated region
        $region21: #{ensemble_forward.1} parent=11 // pred_check
          %p280 = pneg %p206
        $region22: #{ensemble_forward.1} parent=11 // pred_check_branch
          %282 = sbr.rel (%p280) target = $region24
        $region23: #{ensemble_forward.1} parent=11 // pred_region
          _
        $region24: #{ensemble_forward.1} parent=11 // pred_fallthru
          _
        // Predicated region
        $region25: #{ensemble_forward.1} parent=11 // pred_check
          %p283 = pneg %p227
        $region26: #{ensemble_forward.1} parent=11 // pred_check_branch
          %285 = sbr.rel (%p283) target = $region28
        $region27: #{ensemble_forward.1} parent=11 // pred_region
          %287 = vsyncadd [#allocation8], 0
          %s288 = sshll.u32 %s7, 4
          %s289 = int_to_ptr.hbm [resolvable:$true] %s288
          %s290 = sshll.u32 [#allocation7], 4
          %s291 = int_to_ptr.vmem [resolvable:$true] %s290
          %296 = dma.hbm_to_vmem [thread:$0]  %s289, 1024, %s291, [#allocation8], 64, 64, 4
        $region28: #{ensemble_forward.1} parent=11 // pred_fallthru
          _
      $region12: #{ensemble_forward.1} parent=5 // pred_fallthru
        _
      %p297 = scmp.lt.s32.totalorder %s18, 2
      // Predicated region
      $region29: #{ensemble_forward.1} parent=5 // pred_check
        %p298 = pneg %p297
      $region30: #{ensemble_forward.1} parent=5 // pred_check_branch
        %300 = sbr.rel (%p298) target = $region32
      $region31: #{ensemble_forward.1} parent=5 // pred_region
        // Predicated region
        $region33: #{ensemble_forward.1} parent=31 // pred_check
          %p301 = pneg %p52
        $region34: #{ensemble_forward.1} parent=31 // pred_check_branch
          %303 = sbr.rel (%p301) target = $region36
        $region35: #{ensemble_forward.1} parent=31 // pred_region
          %s304 = sand.u32 %s42, 1
          %s305 = sand.u32 %s42, 1
          %s306 = smul.addr %s305, 32
          %s307 = scalar_lea.vmem [#allocation3], %s306
          %s308 = smul.u32 2, %s25
          %s309 = smul.u32 4, %s26
          %s310 = smul.addr %s308, 8
          %s311 = sadd.s32 %s309, %s310
          %s312 = smul.addr %s311, 4
          %s313 = scalar_lea.vmem %s0, %s312
          // Predicated region
          $region37: #{ensemble_forward.1} parent=35 // pred_check
            _
          $region38: #{ensemble_forward.1} parent=35 // pred_check_branch
            %315 = sbr.rel (0) target = $region40
          $region39: #{ensemble_forward.1} parent=35 // pred_region
            // Predicated region
            $region41: #{ensemble_forward.1} parent=39 // pred_check
              _
            $region42: #{ensemble_forward.1} parent=39 // pred_check_branch
              %317 = sbr.rel (0) target = $region44
            $region43: #{ensemble_forward.1} parent=39 // pred_region
              loop: start=0, step=1, limit=1
              $region45: #{ensemble_forward.1} parent=43 // loop_pre_header
                _
              $region46: #{ensemble_forward.1} parent=43 // loop_header
                %s319 = sphi 0, %s323
                %p320 = scmp.ge.s32.totalorder %s319, 1
                %s324 = sphi %s313, %s313
                %s325 = sphi %s307, %s307
              $region47: #{ensemble_forward.1} parent=43 // loop_header_branch
                %322 = sbr.rel (%p320) target = $region51
              $region48: #{ensemble_forward.1} parent=43 // loop_body
                %v326 = vld [vmem:[%s324] sm:$0xff]
                %327 = vst [vmem:[%s325] sm:$0xff] %v326
                %v328 = vld [vmem:[%s324 + $0x8] sm:$0xff]
                %329 = vst [vmem:[%s325 + $0x8] sm:$0xff] %v328
                %v330 = vld [vmem:[%s324 + $0x20] sm:$0xff]
                %331 = vst [vmem:[%s325 + $0x10] sm:$0xff] %v330
                %v332 = vld [vmem:[%s324 + $0x28] sm:$0xff]
                %333 = vst [vmem:[%s325 + $0x18] sm:$0xff] %v332
              $region49: #{ensemble_forward.1} parent=43 // loop_footer
                %s323 = sadd.s32 1, %s319
              $region50: #{ensemble_forward.1} parent=43 // loop_footer_branch
                %318 = sbr.rel target = $region46
              $region51: #{ensemble_forward.1} parent=43 // loop_exit
                _
            $region44: #{ensemble_forward.1} parent=39 // pred_fallthru
              _
            // Predicated region
            $region52: #{ensemble_forward.1} parent=39 // pred_check
              _
            $region53: #{ensemble_forward.1} parent=39 // pred_check_branch
              %335 = sbr.rel target = $region55
            $region54: #{ensemble_forward.1} parent=39 // pred_region
              _
            $region55: #{ensemble_forward.1} parent=39 // pred_fallthru
              _
          $region40: #{ensemble_forward.1} parent=35 // pred_fallthru
            _
          %336 = vnop
        $region36: #{ensemble_forward.1} parent=31 // pred_fallthru
          _
        // Predicated region
        $region56: #{ensemble_forward.1} parent=31 // pred_check
          %p337 = pneg %p80
        $region57: #{ensemble_forward.1} parent=31 // pred_check_branch
          %339 = sbr.rel (%p337) target = $region59
        $region58: #{ensemble_forward.1} parent=31 // pred_region
          %s340 = sand.u32 %s70, 1
          %s341 = sand.u32 %s70, 1
          %s342 = smul.addr %s341, 32
          %s343 = scalar_lea.vmem [#allocation4], %s342
          %s344 = smul.u32 2, %s25
          %s345 = smul.u32 4, %s26
          %s346 = smul.addr %s344, 8
          %s347 = sadd.s32 %s345, %s346
          %s348 = smul.addr %s347, 4
          %s349 = scalar_lea.vmem %s1, %s348
          // Predicated region
          $region60: #{ensemble_forward.1} parent=58 // pred_check
            _
          $region61: #{ensemble_forward.1} parent=58 // pred_check_branch
            %351 = sbr.rel (0) target = $region63
          $region62: #{ensemble_forward.1} parent=58 // pred_region
            // Predicated region
            $region64: #{ensemble_forward.1} parent=62 // pred_check
              _
            $region65: #{ensemble_forward.1} parent=62 // pred_check_branch
              %353 = sbr.rel (0) target = $region67
            $region66: #{ensemble_forward.1} parent=62 // pred_region
              loop: start=0, step=1, limit=1
              $region68: #{ensemble_forward.1} parent=66 // loop_pre_header
                _
              $region69: #{ensemble_forward.1} parent=66 // loop_header
                %s355 = sphi 0, %s359
                %p356 = scmp.ge.s32.totalorder %s355, 1
                %s360 = sphi %s349, %s349
                %s361 = sphi %s343, %s343
              $region70: #{ensemble_forward.1} parent=66 // loop_header_branch
                %358 = sbr.rel (%p356) target = $region74
              $region71: #{ensemble_forward.1} parent=66 // loop_body
                %v362 = vld [vmem:[%s360] sm:$0xff]
                %363 = vst [vmem:[%s361] sm:$0xff] %v362
                %v364 = vld [vmem:[%s360 + $0x8] sm:$0xff]
                %365 = vst [vmem:[%s361 + $0x8] sm:$0xff] %v364
                %v366 = vld [vmem:[%s360 + $0x20] sm:$0xff]
                %367 = vst [vmem:[%s361 + $0x10] sm:$0xff] %v366
                %v368 = vld [vmem:[%s360 + $0x28] sm:$0xff]
                %369 = vst [vmem:[%s361 + $0x18] sm:$0xff] %v368
              $region72: #{ensemble_forward.1} parent=66 // loop_footer
                %s359 = sadd.s32 1, %s355
              $region73: #{ensemble_forward.1} parent=66 // loop_footer_branch
                %354 = sbr.rel target = $region69
              $region74: #{ensemble_forward.1} parent=66 // loop_exit
                _
            $region67: #{ensemble_forward.1} parent=62 // pred_fallthru
              _
            // Predicated region
            $region75: #{ensemble_forward.1} parent=62 // pred_check
              _
            $region76: #{ensemble_forward.1} parent=62 // pred_check_branch
              %371 = sbr.rel target = $region78
            $region77: #{ensemble_forward.1} parent=62 // pred_region
              _
            $region78: #{ensemble_forward.1} parent=62 // pred_fallthru
              _
          $region63: #{ensemble_forward.1} parent=58 // pred_fallthru
            _
          %372 = vnop
        $region59: #{ensemble_forward.1} parent=31 // pred_fallthru
          _
        // Predicated region
        $region79: #{ensemble_forward.1} parent=31 // pred_check
          %p373 = pneg %p132
        $region80: #{ensemble_forward.1} parent=31 // pred_check_branch
          %375 = sbr.rel (%p373) target = $region82
        $region81: #{ensemble_forward.1} parent=31 // pred_region
          %s376 = smul.u32 64, %s26
          %p377 = scmp.lt.s32.totalorder %s376, 127
          %s378 = scalar_select %p377, %s376, 127
          %s379 = smul.addr %s378, 4
          %s380 = scalar_lea.vmem %s3, %s379
          %s381 = smul.u32 64, %s26
        $region82: #{ensemble_forward.1} parent=31 // pred_fallthru
          _
        // Predicated region
        $region83: #{ensemble_forward.1} parent=31 // pred_check
          %p382 = pneg %p158
        $region84: #{ensemble_forward.1} parent=31 // pred_check_branch
          %384 = sbr.rel (%p382) target = $region86
        $region85: #{ensemble_forward.1} parent=31 // pred_region
          %s385 = sand.u32 %s148, 1
          %s386 = scalar_lea.sflag [#allocation6], %s385
          %s387 = sand.u32 %s148, 1
          %s388 = smul.addr %s387, 256
          %s389 = scalar_lea.vmem [#allocation5], %s388
          %s390 = smul.u32 64, %s26
          %392 = vsyncadd %s386, 0
          %s393 = smul.addr %s390, 4
          %s394 = scalar_lea.hbm %s4, %s393
          %s395 = sshll.u32 %s394, 4
          %s396 = int_to_ptr.hbm [resolvable:$true] %s395
          %s397 = sshll.u32 %s389, 4
          %s398 = int_to_ptr.vmem [resolvable:$true] %s397
          %403 = dma.hbm_to_vmem [thread:$0]  %s396, 4096, %s398, %s386, 64, 64, 4
        $region86: #{ensemble_forward.1} parent=31 // pred_fallthru
          _
      $region32: #{ensemble_forward.1} parent=5 // pred_fallthru
        _
      %p404 = scmp.le.s32.totalorder 1, %s18
      %p405 = scmp.lt.s32.totalorder %s18, 3
      %p406 = pnand %p404, %p405
      %p407 = pneg %p406
      // Predicated region
      $region87: #{ensemble_forward.1} parent=5 // pred_check
        _
      $region88: #{ensemble_forward.1} parent=5 // pred_check_branch
        %409 = sbr.rel (%p406) target = $region90
      $region89: #{ensemble_forward.1} parent=5 // pred_region
        %s410 = ssub.s32 %s18, 1
        %s411 = sand.u32 %s45, 1
        %s412 = sand.u32 %s45, 1
        %s413 = smul.addr %s412, 32
        %s414 = scalar_lea.vmem [#allocation3], %s413
        // Predicated region
        $region91: #{ensemble_forward.1} parent=89 // pred_check
          %p415 = pneg %p58
        $region92: #{ensemble_forward.1} parent=89 // pred_check_branch
          %417 = sbr.rel (%p415) target = $region94
        $region93: #{ensemble_forward.1} parent=89 // pred_region
          _
        $region94: #{ensemble_forward.1} parent=89 // pred_fallthru
          _
        %s418 = sand.u32 %s73, 1
        %s419 = sand.u32 %s73, 1
        %s420 = smul.addr %s419, 32
        %s421 = scalar_lea.vmem [#allocation4], %s420
        // Predicated region
        $region95: #{ensemble_forward.1} parent=89 // pred_check
          %p422 = pneg %p86
        $region96: #{ensemble_forward.1} parent=89 // pred_check_branch
          %424 = sbr.rel (%p422) target = $region98
        $region97: #{ensemble_forward.1} parent=89 // pred_region
          _
        $region98: #{ensemble_forward.1} parent=89 // pred_fallthru
          _
        %s425 = sand.u32 %s151, 1
        %s426 = scalar_lea.sflag [#allocation6], %s425
        %s427 = sand.u32 %s151, 1
        %s428 = smul.addr %s427, 256
        %s429 = scalar_lea.vmem [#allocation5], %s428
        // Predicated region
        $region99: #{ensemble_forward.1} parent=89 // pred_check
          %p430 = pneg %p164
        $region100: #{ensemble_forward.1} parent=89 // pred_check_branch
          %432 = sbr.rel (%p430) target = $region102
        $region101: #{ensemble_forward.1} parent=89 // pred_region
          %434 = dma.done %s426, 4096
        $region102: #{ensemble_forward.1} parent=89 // pred_fallthru
          _
        // Predicated region
        $region103: #{ensemble_forward.1} parent=89 // pred_check
          %p435 = pneg %p227
        $region104: #{ensemble_forward.1} parent=89 // pred_check_branch
          %437 = sbr.rel (%p435) target = $region106
        $region105: #{ensemble_forward.1} parent=89 // pred_region
          %439 = dma.done [#allocation8], 1024
        $region106: #{ensemble_forward.1} parent=89 // pred_fallthru
          _
        %s440 = sand.u32 %s45, 1
        %s441 = sand.u32 %s45, 1
        %s442 = smul.addr %s441, 32
        %s443 = scalar_lea.vmem [#allocation3], %s442
        %p444 = pneg %p58
        %p445 = pneg %p55
        %s446 = sand.u32 %s73, 1
        %s447 = sand.u32 %s73, 1
        %s448 = smul.addr %s447, 32
        %s449 = scalar_lea.vmem [#allocation4], %s448
        %p450 = pneg %p86
        %p451 = pneg %p83
        %s452 = smul.u32 2, %s27
        %p453 = scmp.lt.s32.totalorder %s452, 1
        %s454 = scalar_select %p453, %s452, 1
        %s455 = smul.addr %s454, 4
        %s456 = scalar_lea.vmem %s2, %s455
        %p457 = pneg %p112
        %p458 = pneg %p109
        %s459 = smul.u32 64, %s28
        %p460 = scmp.lt.s32.totalorder %s459, 127
        %s461 = scalar_select %p460, %s459, 127
        %s462 = smul.addr %s461, 4
        %s463 = scalar_lea.vmem %s3, %s462
        %p464 = pneg %p138
        %p465 = pneg %p135
        %s466 = sand.u32 %s151, 1
        %s467 = scalar_lea.sflag [#allocation6], %s466
        %s468 = sand.u32 %s151, 1
        %s469 = smul.addr %s468, 256
        %s470 = scalar_lea.vmem [#allocation5], %s469
        %p471 = pneg %p164
        %p472 = pneg %p161
        %p473 = pneg %p185
        %p474 = pneg %p182
        %p475 = pneg %p206
        %p476 = pneg %p203
        %p477 = pneg %p227
        %p478 = pneg %p224
        %p479 = pneg %p253
        %p480 = pneg %p250
        %s481 = smul.u32 2, %s27
        %p482 = scmp.lt.s32.totalorder %s481, 1
        %s483 = scalar_select %p482, %s481, 1
        %s484 = smul.addr %s483, 8
        %s485 = scalar_lea.vmem %s8, %s484
        %s486 = smul.u32 2, %s27
        %s487 = smul.u32 4, %s28
        %s488 = smul.u32 2, %s27
        %s489 = smul.u32 4, %s28
        %s490 = smul.u32 2, %s27
        %p491 = scmp.lt.s32.totalorder %s490, 1
        %s492 = scalar_select %p491, %s490, 1
        %s493 = smul.addr %s492, 4
        %s494 = scalar_lea.vmem %s2, %s493
        %s495 = smul.u32 2, %s27
        %s496 = smul.u32 64, %s28
        %p497 = scmp.lt.s32.totalorder %s496, 127
        %s498 = scalar_select %p497, %s496, 127
        %s499 = smul.addr %s498, 4
        %s500 = scalar_lea.vmem %s3, %s499
        %s501 = smul.u32 64, %s28
        %s502 = smul.u32 64, %s28
        %s503 = smul.u32 2, %s27
        %p504 = scmp.lt.s32.totalorder %s503, 1
        %s505 = scalar_select %p504, %s503, 1
        %s506 = smul.addr %s505, 8
        %s507 = scalar_lea.vmem %s8, %s506
        %s508 = smul.u32 2, %s27
        %p510 = scmp.eq.s32.totalorder %s28, 0
        // Predicated region
        $region107: #{ensemble_forward.1} parent=89 // pred_check
          %p511 = pneg %p510
        $region108: #{ensemble_forward.1} parent=89 // pred_check_branch
          %513 = sbr.rel (%p511) target = $region110
        $region109: #{ensemble_forward.1} parent=89 // pred_region
          %v514 = vld [vmem:[%s494] sm:$0xf]
          %v515 = vld [vmem:[%s494 + $0x4] sm:$0xf]
          %v516 = vld [vmem:[%s5] sm:$0xf]
          %v519 = vunpack.c.l.b16 %v514
          %v520 = vunpack.c.l.b16 %v515
          %v521 = vpack.c.b16 %v520, %v519
          %vm522 = vcmask 64512
          %v524 = vsel %vm522, %v521, 0
          %vm526 = vcmask 1043456
          %v528 = vsel %vm526, %v516, 0
          %530 = vmatpush.bf16.msra.mxu0 0
          %531 = vmatpush.bf16.msra.mxu0 0
          %532 = vmatpush.bf16.msra.mxu0 0
          %533 = vmatpush.bf16.msra.mxu0 0
          %534 = vmatpush.bf16.msra.mxu0 0
          %535 = vmatpush.bf16.msra.mxu0 0
          %536 = vmatpush.bf16.msra.mxu0 0
          %537 = vmatpush.bf16.msra.mxu0 %v528
          %538 = vmatmul.bf16.gmra.mxu0 %v524
          %v539 = vpop.f32.mrf.mxu0
          %v540 = vadd.f32 0.0, %v539
          %v541 = vpop.f32.mrf.mxu0
          %v542 = vadd.f32 0.0, %v541
          %543 = vdwg.mxu0
          %544 = vst [vmem:[#allocation2] sm:$0xff] %v540
          %545 = vst [vmem:[#allocation2 + $0x8] sm:$0xff] %v542
        $region110: #{ensemble_forward.1} parent=89 // pred_fallthru
          _
        %v546 = vld [vmem:[#allocation2] sm:$0xff]
        %v547 = vld [vmem:[#allocation2 + $0x8] sm:$0xff]
        %v548 = vld [vmem:[%s414] sm:$0xff]
        %v549 = vld [vmem:[%s414 + $0x8] sm:$0xff]
        %v550 = vld [vmem:[%s414 + $0x10] sm:$0xff]
        %v551 = vld [vmem:[%s414 + $0x18] sm:$0xff]
        %v552 = vld [vmem:[%s500] sm:$0xf]
        %v553 = vld [vmem:[%s500 + $0x4] sm:$0xf]
        %v554 = vld [vmem:[%s500 + $0x8] sm:$0xf]
        %v555 = vld [vmem:[%s500 + $0xc] sm:$0xf]
        %v556 = vld [vmem:[%s500 + $0x10] sm:$0xf]
        %v557 = vld [vmem:[%s500 + $0x14] sm:$0xf]
        %v558 = vld [vmem:[%s500 + $0x18] sm:$0xf]
        %v559 = vld [vmem:[%s500 + $0x1c] sm:$0xf]
        %v560 = vld [vmem:[%s500 + $0x20] sm:$0xf]
        %v561 = vld [vmem:[%s500 + $0x24] sm:$0xf]
        %v562 = vld [vmem:[%s500 + $0x28] sm:$0xf]
        %v563 = vld [vmem:[%s500 + $0x2c] sm:$0xf]
        %v564 = vld [vmem:[%s500 + $0x30] sm:$0xf]
        %v565 = vld [vmem:[%s500 + $0x34] sm:$0xf]
        %v566 = vld [vmem:[%s500 + $0x38] sm:$0xf]
        %v567 = vld [vmem:[%s500 + $0x3c] sm:$0xf]
        %v568 = vld [vmem:[%s500 + $0x40] sm:$0xf]
        %v569 = vld [vmem:[%s500 + $0x44] sm:$0xf]
        %v570 = vld [vmem:[%s500 + $0x48] sm:$0xf]
        %v571 = vld [vmem:[%s500 + $0x4c] sm:$0xf]
        %v572 = vld [vmem:[%s500 + $0x50] sm:$0xf]
        %v573 = vld [vmem:[%s500 + $0x54] sm:$0xf]
        %v574 = vld [vmem:[%s500 + $0x58] sm:$0xf]
        %v575 = vld [vmem:[%s500 + $0x5c] sm:$0xf]
        %v576 = vld [vmem:[%s500 + $0x60] sm:$0xf]
        %v577 = vld [vmem:[%s500 + $0x64] sm:$0xf]
        %v578 = vld [vmem:[%s500 + $0x68] sm:$0xf]
        %v579 = vld [vmem:[%s500 + $0x6c] sm:$0xf]
        %v580 = vld [vmem:[%s500 + $0x70] sm:$0xf]
        %v581 = vld [vmem:[%s500 + $0x74] sm:$0xf]
        %v582 = vld [vmem:[%s500 + $0x78] sm:$0xf]
        %v583 = vld [vmem:[%s500 + $0x7c] sm:$0xf]
        %v584 = vld [vmem:[%s500 + $0x80] sm:$0xf]
        %v585 = vld [vmem:[%s500 + $0x84] sm:$0xf]
        %v586 = vld [vmem:[%s500 + $0x88] sm:$0xf]
        %v587 = vld [vmem:[%s500 + $0x8c] sm:$0xf]
        %v588 = vld [vmem:[%s500 + $0x90] sm:$0xf]
        %v589 = vld [vmem:[%s500 + $0x94] sm:$0xf]
        %v590 = vld [vmem:[%s500 + $0x98] sm:$0xf]
        %v591 = vld [vmem:[%s500 + $0x9c] sm:$0xf]
        %v592 = vld [vmem:[%s500 + $0xa0] sm:$0xf]
        %v593 = vld [vmem:[%s500 + $0xa4] sm:$0xf]
        %v594 = vld [vmem:[%s500 + $0xa8] sm:$0xf]
        %v595 = vld [vmem:[%s500 + $0xac] sm:$0xf]
        %v596 = vld [vmem:[%s500 + $0xb0] sm:$0xf]
        %v597 = vld [vmem:[%s500 + $0xb4] sm:$0xf]
        %v598 = vld [vmem:[%s500 + $0xb8] sm:$0xf]
        %v599 = vld [vmem:[%s500 + $0xbc] sm:$0xf]
        %v600 = vld [vmem:[%s500 + $0xc0] sm:$0xf]
        %v601 = vld [vmem:[%s500 + $0xc4] sm:$0xf]
        %v602 = vld [vmem:[%s500 + $0xc8] sm:$0xf]
        %v603 = vld [vmem:[%s500 + $0xcc] sm:$0xf]
        %v604 = vld [vmem:[%s500 + $0xd0] sm:$0xf]
        %v605 = vld [vmem:[%s500 + $0xd4] sm:$0xf]
        %v606 = vld [vmem:[%s500 + $0xd8] sm:$0xf]
        %v607 = vld [vmem:[%s500 + $0xdc] sm:$0xf]
        %v608 = vld [vmem:[%s500 + $0xe0] sm:$0xf]
        %v609 = vld [vmem:[%s500 + $0xe4] sm:$0xf]
        %v610 = vld [vmem:[%s500 + $0xe8] sm:$0xf]
        %v611 = vld [vmem:[%s500 + $0xec] sm:$0xf]
        %v612 = vld [vmem:[%s500 + $0xf0] sm:$0xf]
        %v613 = vld [vmem:[%s500 + $0xf4] sm:$0xf]
        %v614 = vld [vmem:[%s500 + $0xf8] sm:$0xf]
        %v615 = vld [vmem:[%s500 + $0xfc] sm:$0xf]
        %v616 = vld [vmem:[%s421] sm:$0xff]
        %v617 = vld [vmem:[%s421 + $0x8] sm:$0xff]
        %v618 = vld [vmem:[%s421 + $0x10] sm:$0xff]
        %v619 = vld [vmem:[%s421 + $0x18] sm:$0xff]
        %v620 = vld [vmem:[%s429] sm:$0xf]
        %v621 = vld [vmem:[%s429 + $0x4] sm:$0xf]
        %v622 = vld [vmem:[%s429 + $0x8] sm:$0xf]
        %v623 = vld [vmem:[%s429 + $0xc] sm:$0xf]
        %v624 = vld [vmem:[%s429 + $0x10] sm:$0xf]
        %v625 = vld [vmem:[%s429 + $0x14] sm:$0xf]
        %v626 = vld [vmem:[%s429 + $0x18] sm:$0xf]
        %v627 = vld [vmem:[%s429 + $0x1c] sm:$0xf]
        %v628 = vld [vmem:[%s429 + $0x20] sm:$0xf]
        %v629 = vld [vmem:[%s429 + $0x24] sm:$0xf]
        %v630 = vld [vmem:[%s429 + $0x28] sm:$0xf]
        %v631 = vld [vmem:[%s429 + $0x2c] sm:$0xf]
        %v632 = vld [vmem:[%s429 + $0x30] sm:$0xf]
        %v633 = vld [vmem:[%s429 + $0x34] sm:$0xf]
        %v634 = vld [vmem:[%s429 + $0x38] sm:$0xf]
        %v635 = vld [vmem:[%s429 + $0x3c] sm:$0xf]
        %v636 = vld [vmem:[%s429 + $0x40] sm:$0xf]
        %v637 = vld [vmem:[%s429 + $0x44] sm:$0xf]
        %v638 = vld [vmem:[%s429 + $0x48] sm:$0xf]
        %v639 = vld [vmem:[%s429 + $0x4c] sm:$0xf]
        %v640 = vld [vmem:[%s429 + $0x50] sm:$0xf]
        %v641 = vld [vmem:[%s429 + $0x54] sm:$0xf]
        %v642 = vld [vmem:[%s429 + $0x58] sm:$0xf]
        %v643 = vld [vmem:[%s429 + $0x5c] sm:$0xf]
        %v644 = vld [vmem:[%s429 + $0x60] sm:$0xf]
        %v645 = vld [vmem:[%s429 + $0x64] sm:$0xf]
        %v646 = vld [vmem:[%s429 + $0x68] sm:$0xf]
        %v647 = vld [vmem:[%s429 + $0x6c] sm:$0xf]
        %v648 = vld [vmem:[%s429 + $0x70] sm:$0xf]
        %v649 = vld [vmem:[%s429 + $0x74] sm:$0xf]
        %v650 = vld [vmem:[%s429 + $0x78] sm:$0xf]
        %v651 = vld [vmem:[%s429 + $0x7c] sm:$0xf]
        %v652 = vld [vmem:[%s429 + $0x80] sm:$0xf]
        %v653 = vld [vmem:[%s429 + $0x84] sm:$0xf]
        %v654 = vld [vmem:[%s429 + $0x88] sm:$0xf]
        %v655 = vld [vmem:[%s429 + $0x8c] sm:$0xf]
        %v656 = vld [vmem:[%s429 + $0x90] sm:$0xf]
        %v657 = vld [vmem:[%s429 + $0x94] sm:$0xf]
        %v658 = vld [vmem:[%s429 + $0x98] sm:$0xf]
        %v659 = vld [vmem:[%s429 + $0x9c] sm:$0xf]
        %v660 = vld [vmem:[%s429 + $0xa0] sm:$0xf]
        %v661 = vld [vmem:[%s429 + $0xa4] sm:$0xf]
        %v662 = vld [vmem:[%s429 + $0xa8] sm:$0xf]
        %v663 = vld [vmem:[%s429 + $0xac] sm:$0xf]
        %v664 = vld [vmem:[%s429 + $0xb0] sm:$0xf]
        %v665 = vld [vmem:[%s429 + $0xb4] sm:$0xf]
        %v666 = vld [vmem:[%s429 + $0xb8] sm:$0xf]
        %v667 = vld [vmem:[%s429 + $0xbc] sm:$0xf]
        %v668 = vld [vmem:[%s429 + $0xc0] sm:$0xf]
        %v669 = vld [vmem:[%s429 + $0xc4] sm:$0xf]
        %v670 = vld [vmem:[%s429 + $0xc8] sm:$0xf]
        %v671 = vld [vmem:[%s429 + $0xcc] sm:$0xf]
        %v672 = vld [vmem:[%s429 + $0xd0] sm:$0xf]
        %v673 = vld [vmem:[%s429 + $0xd4] sm:$0xf]
        %v674 = vld [vmem:[%s429 + $0xd8] sm:$0xf]
        %v675 = vld [vmem:[%s429 + $0xdc] sm:$0xf]
        %v676 = vld [vmem:[%s429 + $0xe0] sm:$0xf]
        %v677 = vld [vmem:[%s429 + $0xe4] sm:$0xf]
        %v678 = vld [vmem:[%s429 + $0xe8] sm:$0xf]
        %v679 = vld [vmem:[%s429 + $0xec] sm:$0xf]
        %v680 = vld [vmem:[%s429 + $0xf0] sm:$0xf]
        %v681 = vld [vmem:[%s429 + $0xf4] sm:$0xf]
        %v682 = vld [vmem:[%s429 + $0xf8] sm:$0xf]
        %v683 = vld [vmem:[%s429 + $0xfc] sm:$0xf]
        %v688 = vunpack.c.l.b16 %v616
        %v689 = vunpack.c.h.b16 %v616
        %v690 = vunpack.c.l.b16 %v617
        %v691 = vunpack.c.h.b16 %v617
        %v692 = vunpack.c.l.b16 %v618
        %v693 = vunpack.c.h.b16 %v618
        %v694 = vunpack.c.l.b16 %v619
        %v695 = vunpack.c.h.b16 %v619
        %v696 = vpack.c.b16 %v692, %v688
        %v697 = vpack.c.b16 %v693, %v689
        %v698 = vpack.c.b16 %v694, %v690
        %v699 = vpack.c.b16 %v695, %v691
        %v768 = vunpack.c.l.b16 %v620
        %v769 = vunpack.c.l.b16 %v621
        %v770 = vunpack.c.l.b16 %v622
        %v771 = vunpack.c.l.b16 %v623
        %v772 = vunpack.c.l.b16 %v624
        %v773 = vunpack.c.l.b16 %v625
        %v774 = vunpack.c.l.b16 %v626
        %v775 = vunpack.c.l.b16 %v627
        %v776 = vunpack.c.l.b16 %v628
        %v777 = vunpack.c.l.b16 %v629
        %v778 = vunpack.c.l.b16 %v630
        %v779 = vunpack.c.l.b16 %v631
        %v780 = vunpack.c.l.b16 %v632
        %v781 = vunpack.c.l.b16 %v633
        %v782 = vunpack.c.l.b16 %v634
        %v783 = vunpack.c.l.b16 %v635
        %v784 = vunpack.c.l.b16 %v636
        %v785 = vunpack.c.l.b16 %v637
        %v786 = vunpack.c.l.b16 %v638
        %v787 = vunpack.c.l.b16 %v639
        %v788 = vunpack.c.l.b16 %v640
        %v789 = vunpack.c.l.b16 %v641
        %v790 = vunpack.c.l.b16 %v642
        %v791 = vunpack.c.l.b16 %v643
        %v792 = vunpack.c.l.b16 %v644
        %v793 = vunpack.c.l.b16 %v645
        %v794 = vunpack.c.l.b16 %v646
        %v795 = vunpack.c.l.b16 %v647
        %v796 = vunpack.c.l.b16 %v648
        %v797 = vunpack.c.l.b16 %v649
        %v798 = vunpack.c.l.b16 %v650
        %v799 = vunpack.c.l.b16 %v651
        %v800 = vunpack.c.l.b16 %v652
        %v801 = vunpack.c.l.b16 %v653
        %v802 = vunpack.c.l.b16 %v654
        %v803 = vunpack.c.l.b16 %v655
        %v804 = vunpack.c.l.b16 %v656
        %v805 = vunpack.c.l.b16 %v657
        %v806 = vunpack.c.l.b16 %v658
        %v807 = vunpack.c.l.b16 %v659
        %v808 = vunpack.c.l.b16 %v660
        %v809 = vunpack.c.l.b16 %v661
        %v810 = vunpack.c.l.b16 %v662
        %v811 = vunpack.c.l.b16 %v663
        %v812 = vunpack.c.l.b16 %v664
        %v813 = vunpack.c.l.b16 %v665
        %v814 = vunpack.c.l.b16 %v666
        %v815 = vunpack.c.l.b16 %v667
        %v816 = vunpack.c.l.b16 %v668
        %v817 = vunpack.c.l.b16 %v669
        %v818 = vunpack.c.l.b16 %v670
        %v819 = vunpack.c.l.b16 %v671
        %v820 = vunpack.c.l.b16 %v672
        %v821 = vunpack.c.l.b16 %v673
        %v822 = vunpack.c.l.b16 %v674
        %v823 = vunpack.c.l.b16 %v675
        %v824 = vunpack.c.l.b16 %v676
        %v825 = vunpack.c.l.b16 %v677
        %v826 = vunpack.c.l.b16 %v678
        %v827 = vunpack.c.l.b16 %v679
        %v828 = vunpack.c.l.b16 %v680
        %v829 = vunpack.c.l.b16 %v681
        %v830 = vunpack.c.l.b16 %v682
        %v831 = vunpack.c.l.b16 %v683
        %v832 = vpack.c.b16 %v769, %v768
        %v833 = vpack.c.b16 %v771, %v770
        %v834 = vpack.c.b16 %v773, %v772
        %v835 = vpack.c.b16 %v775, %v774
        %v836 = vpack.c.b16 %v777, %v776
        %v837 = vpack.c.b16 %v779, %v778
        %v838 = vpack.c.b16 %v781, %v780
        %v839 = vpack.c.b16 %v783, %v782
        %v840 = vpack.c.b16 %v785, %v784
        %v841 = vpack.c.b16 %v787, %v786
        %v842 = vpack.c.b16 %v789, %v788
        %v843 = vpack.c.b16 %v791, %v790
        %v844 = vpack.c.b16 %v793, %v792
        %v845 = vpack.c.b16 %v795, %v794
        %v846 = vpack.c.b16 %v797, %v796
        %v847 = vpack.c.b16 %v799, %v798
        %v848 = vpack.c.b16 %v801, %v800
        %v849 = vpack.c.b16 %v803, %v802
        %v850 = vpack.c.b16 %v805, %v804
        %v851 = vpack.c.b16 %v807, %v806
        %v852 = vpack.c.b16 %v809, %v808
        %v853 = vpack.c.b16 %v811, %v810
        %v854 = vpack.c.b16 %v813, %v812
        %v855 = vpack.c.b16 %v815, %v814
        %v856 = vpack.c.b16 %v817, %v816
        %v857 = vpack.c.b16 %v819, %v818
        %v858 = vpack.c.b16 %v821, %v820
        %v859 = vpack.c.b16 %v823, %v822
        %v860 = vpack.c.b16 %v825, %v824
        %v861 = vpack.c.b16 %v827, %v826
        %v862 = vpack.c.b16 %v829, %v828
        %v863 = vpack.c.b16 %v831, %v830
        %896 = vmatpush.bf16.msra.mxu0 %v839
        %897 = vmatpush.bf16.msra.mxu0 %v838
        %898 = vmatpush.bf16.msra.mxu0 %v837
        %899 = vmatpush.bf16.msra.mxu0 %v836
        %900 = vmatpush.bf16.msra.mxu0 %v835
        %901 = vmatpush.bf16.msra.mxu0 %v834
        %902 = vmatpush.bf16.msra.mxu0 %v833
        %903 = vmatpush.bf16.msra.mxu0 %v832
        %904 = vmatmul.bf16.gmra.mxu0 %v696
        %v905 = vpop.f32.mrf.mxu0
        %v906 = vadd.f32 0.0, %v905
        %v907 = vpop.f32.mrf.mxu0
        %v908 = vadd.f32 0.0, %v907
        %909 = vdwg.mxu0
        %910 = vmatpush.bf16.msra.mxu0 %v847
        %911 = vmatpush.bf16.msra.mxu0 %v846
        %912 = vmatpush.bf16.msra.mxu0 %v845
        %913 = vmatpush.bf16.msra.mxu0 %v844
        %914 = vmatpush.bf16.msra.mxu0 %v843
        %915 = vmatpush.bf16.msra.mxu0 %v842
        %916 = vmatpush.bf16.msra.mxu0 %v841
        %917 = vmatpush.bf16.msra.mxu0 %v840
        %918 = vmatmul.bf16.gmra.mxu0 %v697
        %v919 = vpop.f32.mrf.mxu0
        %v920 = vadd.f32 %v906, %v919
        %v921 = vpop.f32.mrf.mxu0
        %v922 = vadd.f32 %v908, %v921
        %923 = vdwg.mxu0
        %924 = vmatpush.bf16.msra.mxu0 %v855
        %925 = vmatpush.bf16.msra.mxu0 %v854
        %926 = vmatpush.bf16.msra.mxu0 %v853
        %927 = vmatpush.bf16.msra.mxu0 %v852
        %928 = vmatpush.bf16.msra.mxu0 %v851
        %929 = vmatpush.bf16.msra.mxu0 %v850
        %930 = vmatpush.bf16.msra.mxu0 %v849
        %931 = vmatpush.bf16.msra.mxu0 %v848
        %932 = vmatmul.bf16.gmra.mxu0 %v698
        %v933 = vpop.f32.mrf.mxu0
        %v934 = vadd.f32 %v920, %v933
        %v935 = vpop.f32.mrf.mxu0
        %v936 = vadd.f32 %v922, %v935
        %937 = vdwg.mxu0
        %938 = vmatpush.bf16.msra.mxu0 %v863
        %939 = vmatpush.bf16.msra.mxu0 %v862
        %940 = vmatpush.bf16.msra.mxu0 %v861
        %941 = vmatpush.bf16.msra.mxu0 %v860
        %942 = vmatpush.bf16.msra.mxu0 %v859
        %943 = vmatpush.bf16.msra.mxu0 %v858
        %944 = vmatpush.bf16.msra.mxu0 %v857
        %945 = vmatpush.bf16.msra.mxu0 %v856
        %946 = vmatmul.bf16.gmra.mxu0 %v699
        %v947 = vpop.f32.mrf.mxu0
        %v948 = vadd.f32 %v934, %v947
        %v949 = vpop.f32.mrf.mxu0
        %v950 = vadd.f32 %v936, %v949
        %951 = vdwg.mxu0
        %v956 = vunpack.c.l.b16 %v548
        %v957 = vunpack.c.h.b16 %v548
        %v958 = vunpack.c.l.b16 %v549
        %v959 = vunpack.c.h.b16 %v549
        %v960 = vunpack.c.l.b16 %v550
        %v961 = vunpack.c.h.b16 %v550
        %v962 = vunpack.c.l.b16 %v551
        %v963 = vunpack.c.h.b16 %v551
        %v964 = vpack.c.b16 %v960, %v956
        %v965 = vpack.c.b16 %v961, %v957
        %v966 = vpack.c.b16 %v962, %v958
        %v967 = vpack.c.b16 %v963, %v959
        %v1036 = vunpack.c.l.b16 %v552
        %v1037 = vunpack.c.l.b16 %v553
        %v1038 = vunpack.c.l.b16 %v554
        %v1039 = vunpack.c.l.b16 %v555
        %v1040 = vunpack.c.l.b16 %v556
        %v1041 = vunpack.c.l.b16 %v557
        %v1042 = vunpack.c.l.b16 %v558
        %v1043 = vunpack.c.l.b16 %v559
        %v1044 = vunpack.c.l.b16 %v560
        %v1045 = vunpack.c.l.b16 %v561
        %v1046 = vunpack.c.l.b16 %v562
        %v1047 = vunpack.c.l.b16 %v563
        %v1048 = vunpack.c.l.b16 %v564
        %v1049 = vunpack.c.l.b16 %v565
        %v1050 = vunpack.c.l.b16 %v566
        %v1051 = vunpack.c.l.b16 %v567
        %v1052 = vunpack.c.l.b16 %v568
        %v1053 = vunpack.c.l.b16 %v569
        %v1054 = vunpack.c.l.b16 %v570
        %v1055 = vunpack.c.l.b16 %v571
        %v1056 = vunpack.c.l.b16 %v572
        %v1057 = vunpack.c.l.b16 %v573
        %v1058 = vunpack.c.l.b16 %v574
        %v1059 = vunpack.c.l.b16 %v575
        %v1060 = vunpack.c.l.b16 %v576
        %v1061 = vunpack.c.l.b16 %v577
        %v1062 = vunpack.c.l.b16 %v578
        %v1063 = vunpack.c.l.b16 %v579
        %v1064 = vunpack.c.l.b16 %v580
        %v1065 = vunpack.c.l.b16 %v581
        %v1066 = vunpack.c.l.b16 %v582
        %v1067 = vunpack.c.l.b16 %v583
        %v1068 = vunpack.c.l.b16 %v584
        %v1069 = vunpack.c.l.b16 %v585
        %v1070 = vunpack.c.l.b16 %v586
        %v1071 = vunpack.c.l.b16 %v587
        %v1072 = vunpack.c.l.b16 %v588
        %v1073 = vunpack.c.l.b16 %v589
        %v1074 = vunpack.c.l.b16 %v590
        %v1075 = vunpack.c.l.b16 %v591
        %v1076 = vunpack.c.l.b16 %v592
        %v1077 = vunpack.c.l.b16 %v593
        %v1078 = vunpack.c.l.b16 %v594
        %v1079 = vunpack.c.l.b16 %v595
        %v1080 = vunpack.c.l.b16 %v596
        %v1081 = vunpack.c.l.b16 %v597
        %v1082 = vunpack.c.l.b16 %v598
        %v1083 = vunpack.c.l.b16 %v599
        %v1084 = vunpack.c.l.b16 %v600
        %v1085 = vunpack.c.l.b16 %v601
        %v1086 = vunpack.c.l.b16 %v602
        %v1087 = vunpack.c.l.b16 %v603
        %v1088 = vunpack.c.l.b16 %v604
        %v1089 = vunpack.c.l.b16 %v605
        %v1090 = vunpack.c.l.b16 %v606
        %v1091 = vunpack.c.l.b16 %v607
        %v1092 = vunpack.c.l.b16 %v608
        %v1093 = vunpack.c.l.b16 %v609
        %v1094 = vunpack.c.l.b16 %v610
        %v1095 = vunpack.c.l.b16 %v611
        %v1096 = vunpack.c.l.b16 %v612
        %v1097 = vunpack.c.l.b16 %v613
        %v1098 = vunpack.c.l.b16 %v614
        %v1099 = vunpack.c.l.b16 %v615
        %v1100 = vpack.c.b16 %v1037, %v1036
        %v1101 = vpack.c.b16 %v1039, %v1038
        %v1102 = vpack.c.b16 %v1041, %v1040
        %v1103 = vpack.c.b16 %v1043, %v1042
        %v1104 = vpack.c.b16 %v1045, %v1044
        %v1105 = vpack.c.b16 %v1047, %v1046
        %v1106 = vpack.c.b16 %v1049, %v1048
        %v1107 = vpack.c.b16 %v1051, %v1050
        %v1108 = vpack.c.b16 %v1053, %v1052
        %v1109 = vpack.c.b16 %v1055, %v1054
        %v1110 = vpack.c.b16 %v1057, %v1056
        %v1111 = vpack.c.b16 %v1059, %v1058
        %v1112 = vpack.c.b16 %v1061, %v1060
        %v1113 = vpack.c.b16 %v1063, %v1062
        %v1114 = vpack.c.b16 %v1065, %v1064
        %v1115 = vpack.c.b16 %v1067, %v1066
        %v1116 = vpack.c.b16 %v1069, %v1068
        %v1117 = vpack.c.b16 %v1071, %v1070
        %v1118 = vpack.c.b16 %v1073, %v1072
        %v1119 = vpack.c.b16 %v1075, %v1074
        %v1120 = vpack.c.b16 %v1077, %v1076
        %v1121 = vpack.c.b16 %v1079, %v1078
        %v1122 = vpack.c.b16 %v1081, %v1080
        %v1123 = vpack.c.b16 %v1083, %v1082
        %v1124 = vpack.c.b16 %v1085, %v1084
        %v1125 = vpack.c.b16 %v1087, %v1086
        %v1126 = vpack.c.b16 %v1089, %v1088
        %v1127 = vpack.c.b16 %v1091, %v1090
        %v1128 = vpack.c.b16 %v1093, %v1092
        %v1129 = vpack.c.b16 %v1095, %v1094
        %v1130 = vpack.c.b16 %v1097, %v1096
        %v1131 = vpack.c.b16 %v1099, %v1098
        %1164 = vmatpush.bf16.msra.mxu0 %v1107
        %1165 = vmatpush.bf16.msra.mxu0 %v1106
        %1166 = vmatpush.bf16.msra.mxu0 %v1105
        %1167 = vmatpush.bf16.msra.mxu0 %v1104
        %1168 = vmatpush.bf16.msra.mxu0 %v1103
        %1169 = vmatpush.bf16.msra.mxu0 %v1102
        %1170 = vmatpush.bf16.msra.mxu0 %v1101
        %1171 = vmatpush.bf16.msra.mxu0 %v1100
        %1172 = vmatmul.bf16.gmra.mxu0 %v964
        %v1173 = vpop.f32.mrf.mxu0
        %v1174 = vadd.f32 %v948, %v1173
        %v1175 = vpop.f32.mrf.mxu0
        %v1176 = vadd.f32 %v950, %v1175
        %1177 = vdwg.mxu0
        %1178 = vmatpush.bf16.msra.mxu0 %v1115
        %1179 = vmatpush.bf16.msra.mxu0 %v1114
        %1180 = vmatpush.bf16.msra.mxu0 %v1113
        %1181 = vmatpush.bf16.msra.mxu0 %v1112
        %1182 = vmatpush.bf16.msra.mxu0 %v1111
        %1183 = vmatpush.bf16.msra.mxu0 %v1110
        %1184 = vmatpush.bf16.msra.mxu0 %v1109
        %1185 = vmatpush.bf16.msra.mxu0 %v1108
        %1186 = vmatmul.bf16.gmra.mxu0 %v965
        %v1187 = vpop.f32.mrf.mxu0
        %v1188 = vadd.f32 %v1174, %v1187
        %v1189 = vpop.f32.mrf.mxu0
        %v1190 = vadd.f32 %v1176, %v1189
        %1191 = vdwg.mxu0
        %1192 = vmatpush.bf16.msra.mxu0 %v1123
        %1193 = vmatpush.bf16.msra.mxu0 %v1122
        %1194 = vmatpush.bf16.msra.mxu0 %v1121
        %1195 = vmatpush.bf16.msra.mxu0 %v1120
        %1196 = vmatpush.bf16.msra.mxu0 %v1119
        %1197 = vmatpush.bf16.msra.mxu0 %v1118
        %1198 = vmatpush.bf16.msra.mxu0 %v1117
        %1199 = vmatpush.bf16.msra.mxu0 %v1116
        %1200 = vmatmul.bf16.gmra.mxu0 %v966
        %v1201 = vpop.f32.mrf.mxu0
        %v1202 = vadd.f32 %v1188, %v1201
        %v1203 = vpop.f32.mrf.mxu0
        %v1204 = vadd.f32 %v1190, %v1203
        %1205 = vdwg.mxu0
        %1206 = vmatpush.bf16.msra.mxu0 %v1131
        %1207 = vmatpush.bf16.msra.mxu0 %v1130
        %1208 = vmatpush.bf16.msra.mxu0 %v1129
        %1209 = vmatpush.bf16.msra.mxu0 %v1128
        %1210 = vmatpush.bf16.msra.mxu0 %v1127
        %1211 = vmatpush.bf16.msra.mxu0 %v1126
        %1212 = vmatpush.bf16.msra.mxu0 %v1125
        %1213 = vmatpush.bf16.msra.mxu0 %v1124
        %1214 = vmatmul.bf16.gmra.mxu0 %v967
        %v1215 = vpop.f32.mrf.mxu0
        %v1216 = vadd.f32 %v1202, %v1215
        %v1217 = vpop.f32.mrf.mxu0
        %v1218 = vadd.f32 %v1204, %v1217
        %1219 = vdwg.mxu0
        %v1220 = vadd.f32 %v546, %v1216
        %v1221 = vadd.f32 %v547, %v1218
        %1222 = vst [vmem:[#allocation2] sm:$0xff] %v1220
        %1223 = vst [vmem:[#allocation2 + $0x8] sm:$0xff] %v1221
        %p1224 = scmp.eq.s32.totalorder %s28, 1
        // Predicated region
        $region111: #{ensemble_forward.1} parent=89 // pred_check
          %p1225 = pneg %p1224
        $region112: #{ensemble_forward.1} parent=89 // pred_check_branch
          %1227 = sbr.rel (%p1225) target = $region114
        $region113: #{ensemble_forward.1} parent=89 // pred_region
          %v1228 = vld [vmem:[#allocation2] sm:$0xff]
          %v1229 = vld [vmem:[#allocation2 + $0x8] sm:$0xff]
          %v1230 = vld [vmem:[%s6] sm:$0x1]
          %v1232 = vperm.slane %v1230, 0
          %v1234 = vadd.f32 %v1228, %v1232
          %v1235 = vadd.f32 %v1229, %v1232
          %v1236 = vxor.u32 %v1234, 2147483648
          %v1237 = vxor.u32 %v1235, 2147483648
          %v1238 = vmul.f32 %v1236, 1.442695
          %v1239 = vpow.pop %v1238
          %v1240 = vmul.f32 %v1237, 1.442695
          %v1241 = vpow.pop %v1240
          %v1242 = vadd.f32 %v1239, 1.0
          %v1243 = vadd.f32 %v1241, 1.0
          %v1244 = vrcp.pop %v1242
          %v1245 = vmul.f32 %v1242, %v1244
          %v1246 = vsub.f32 1.0, %v1245
          %v1247 = vmul.f32 %v1244, %v1246
          %v1248 = vadd.f32 %v1244, %v1247
          %vm1249 = vweird.f32 %v1242
          %vm1250 = vweird.f32 %v1244
          %vm1251 = vmor %vm1249, %vm1250
          %v1252 = vsel %vm1251, %v1244, %v1248
          %v1253 = vand.u32 2147483647, %v1242
          %vm1254 = vcmp.eq.f32.partialorder %v1253, 8.507059e+37
          %v1255 = vand.u32 %v1242, 2147483648
          %v1256 = vor.u32 1.1754944e-38, %v1255
          %v1257 = vsel %vm1254, %v1256, %v1252
          %v1258 = vmul.f32 1.0, %v1257
          %v1259 = vrcp.pop %v1243
          %v1260 = vmul.f32 %v1243, %v1259
          %v1261 = vsub.f32 1.0, %v1260
          %v1262 = vmul.f32 %v1259, %v1261
          %v1263 = vadd.f32 %v1259, %v1262
          %vm1264 = vweird.f32 %v1243
          %vm1265 = vweird.f32 %v1259
          %vm1266 = vmor %vm1264, %vm1265
          %v1267 = vsel %vm1266, %v1259, %v1263
          %v1268 = vand.u32 2147483647, %v1243
          %vm1269 = vcmp.eq.f32.partialorder %v1268, 8.507059e+37
          %v1270 = vand.u32 %v1243, 2147483648
          %v1271 = vor.u32 1.1754944e-38, %v1270
          %v1272 = vsel %vm1269, %v1271, %v1267
          %v1273 = vmul.f32 1.0, %v1272
          %v1274 = vpack.c.bf16 %v1273, %v1258
          %v1275 = vld [vmem:[#allocation7] sm:$0xf]
          %v1276 = vld [vmem:[#allocation7 + $0x4] sm:$0xf]
          %v1277 = vld [vmem:[#allocation7 + $0x8] sm:$0xf]
          %v1278 = vld [vmem:[#allocation7 + $0xc] sm:$0xf]
          %v1279 = vld [vmem:[#allocation7 + $0x10] sm:$0xf]
          %v1280 = vld [vmem:[#allocation7 + $0x14] sm:$0xf]
          %v1281 = vld [vmem:[#allocation7 + $0x18] sm:$0xf]
          %v1282 = vld [vmem:[#allocation7 + $0x1c] sm:$0xf]
          %v1283 = vld [vmem:[#allocation7 + $0x20] sm:$0xf]
          %v1284 = vld [vmem:[#allocation7 + $0x24] sm:$0xf]
          %v1285 = vld [vmem:[#allocation7 + $0x28] sm:$0xf]
          %v1286 = vld [vmem:[#allocation7 + $0x2c] sm:$0xf]
          %v1287 = vld [vmem:[#allocation7 + $0x30] sm:$0xf]
          %v1288 = vld [vmem:[#allocation7 + $0x34] sm:$0xf]
          %v1289 = vld [vmem:[#allocation7 + $0x38] sm:$0xf]
          %v1290 = vld [vmem:[#allocation7 + $0x3c] sm:$0xf]
          %v1307 = vunpack.c.l.b16 %v1275
          %v1308 = vunpack.c.l.b16 %v1276
          %v1309 = vunpack.c.l.b16 %v1277
          %v1310 = vunpack.c.l.b16 %v1278
          %v1311 = vunpack.c.l.b16 %v1279
          %v1312 = vunpack.c.l.b16 %v1280
          %v1313 = vunpack.c.l.b16 %v1281
          %v1314 = vunpack.c.l.b16 %v1282
          %v1315 = vunpack.c.l.b16 %v1283
          %v1316 = vunpack.c.l.b16 %v1284
          %v1317 = vunpack.c.l.b16 %v1285
          %v1318 = vunpack.c.l.b16 %v1286
          %v1319 = vunpack.c.l.b16 %v1287
          %v1320 = vunpack.c.l.b16 %v1288
          %v1321 = vunpack.c.l.b16 %v1289
          %v1322 = vunpack.c.l.b16 %v1290
          %v1323 = vpack.c.b16 %v1308, %v1307
          %v1324 = vpack.c.b16 %v1310, %v1309
          %v1325 = vpack.c.b16 %v1312, %v1311
          %v1326 = vpack.c.b16 %v1314, %v1313
          %v1327 = vpack.c.b16 %v1316, %v1315
          %v1328 = vpack.c.b16 %v1318, %v1317
          %v1329 = vpack.c.b16 %v1320, %v1319
          %v1330 = vpack.c.b16 %v1322, %v1321
          %1339 = vmatpush.bf16.msra.mxu0 %v1330
          %1340 = vmatpush.bf16.msra.mxu0 %v1329
          %1341 = vmatpush.bf16.msra.mxu0 %v1328
          %1342 = vmatpush.bf16.msra.mxu0 %v1327
          %1343 = vmatpush.bf16.msra.mxu0 %v1326
          %1344 = vmatpush.bf16.msra.mxu0 %v1325
          %1345 = vmatpush.bf16.msra.mxu0 %v1324
          %1346 = vmatpush.bf16.msra.mxu0 %v1323
          %1347 = vmatmul.bf16.gmra.mxu0 %v1274
          %v1348 = vpop.f32.mrf.mxu0
          %v1349 = vadd.f32 0.0, %v1348
          %v1350 = vpop.f32.mrf.mxu0
          %v1351 = vadd.f32 0.0, %v1350
          %1352 = vdwg.mxu0
          %1353 = vst [vmem:[%s507] sm:$0xff] %v1349
          %1354 = vst [vmem:[%s507 + $0x8] sm:$0xff] %v1351
        $region114: #{ensemble_forward.1} parent=89 // pred_fallthru
          _
        %s1355 = smul.u32 2, %s27
        %p1356 = scmp.lt.s32.totalorder %s1355, 1
        %s1357 = scalar_select %p1356, %s1355, 1
        %s1358 = smul.addr %s1357, 8
        %s1359 = scalar_lea.vmem %s8, %s1358
        // Predicated region
        $region115: #{ensemble_forward.1} parent=89 // pred_check
          %p1360 = pneg %p250
        $region116: #{ensemble_forward.1} parent=89 // pred_check_branch
          %1362 = sbr.rel (%p1360) target = $region118
        $region117: #{ensemble_forward.1} parent=89 // pred_region
          %s1363 = smul.u32 2, %s27
        $region118: #{ensemble_forward.1} parent=89 // pred_fallthru
          _
        // Predicated region
        $region119: #{ensemble_forward.1} parent=89 // pred_check
          %p1364 = pneg %p250
        $region120: #{ensemble_forward.1} parent=89 // pred_check_branch
          %1366 = sbr.rel (%p1364) target = $region122
        $region121: #{ensemble_forward.1} parent=89 // pred_region
          %s1367 = smul.u32 2, %s27
          %p1368 = scmp.lt.s32.totalorder %s1367, 1
          %s1369 = scalar_select %p1368, %s1367, 1
          %s1370 = smul.addr %s1369, 8
          %s1371 = scalar_lea.vmem %s8, %s1370
        $region122: #{ensemble_forward.1} parent=89 // pred_fallthru
          _
      $region90: #{ensemble_forward.1} parent=5 // pred_fallthru
        _
      %p1372 = scmp.le.s32.totalorder 2, %s18
      // Predicated region
      $region123: #{ensemble_forward.1} parent=5 // pred_check
        %p1373 = pneg %p1372
      $region124: #{ensemble_forward.1} parent=5 // pred_check_branch
        %1375 = sbr.rel (%p1373) target = $region126
      $region125: #{ensemble_forward.1} parent=5 // pred_region
        %s1376 = ssub.s32 %s18, 2
      $region126: #{ensemble_forward.1} parent=5 // pred_fallthru
        _
    $region6: #{ensemble_forward.1} parent=1 // loop_footer
      %s22 = sadd.s32 1, %s18
    $region7: #{ensemble_forward.1} parent=1 // loop_footer_branch
      %17 = sbr.rel target = $region3
    $region8: #{ensemble_forward.1} parent=1 // loop_exit
      _
    %1377 = vsyncpa [#allocation6], 1
    %s1378 = scalar_lea.sflag [#allocation6], 1
    %1379 = vsyncpa %s1378, 1
    %1380 = vsyncpa [#allocation8], 1

</llo_original>
